<compile_context>
chip_gen: v6e
topology: v6e:2x2x1
jax: 0.10.0
libtpu: 0.0.40
codegen_flags: <defaults>
</compile_context>

<pallas_src>
import functools

import numpy as np

import jax
import jax.numpy as jnp
from jax.experimental import pallas as pl
from jax.experimental.pallas import tpu as pltpu

BN_EPS = 1e-5


# ----------------------------------------------------------------------------
# Static 3x3 tap validity masks (zero padding / image-boundary handling).
# ----------------------------------------------------------------------------
def _tap_masks(n, h, w):
    """(9, N*H*W) 0/1 masks: validity of each 3x3 tap per flattened position."""
    m = np.arange(n * h * w)
    hh = (m // w) % h
    ww = m % w
    rows = []
    for di in (-1, 0, 1):
        for dj in (-1, 0, 1):
            rows.append((hh + di >= 0) & (hh + di < h) &
                        (ww + dj >= 0) & (ww + dj < w))
    return np.stack(rows, axis=0).astype(np.float32)


# ----------------------------------------------------------------------------
# Fused FixedLayer kernel: 1x1 conv+BN+ReLU -> 3x3 conv+BN+ReLU -> dim_reduc.
# All activations are kept transposed as (C, M) so M sits on the lane axis.
# ----------------------------------------------------------------------------
def _make_fixed_layer_kernel(n_batch, height, width, c_mid, eps=BN_EPS):
    hw = height * width
    m = n_batch * hw
    inv_m = 1.0 / float(m)

    def batchnorm(x, g_ref, b_ref):
        # Batch statistics over all N*H*W positions (lane axis), biased variance,
        # two-pass form (numerically safer than E[x^2] - mean^2).
        mean = jnp.sum(x, axis=1, keepdims=True) * inv_m
        d = x - mean
        var = jnp.sum(d * d, axis=1, keepdims=True) * inv_m
        return g_ref[...] * d * jax.lax.rsqrt(var + eps) + b_ref[...]

    def kernel(x_ref, prev_ref, mask_ref,
               wi_ref, gi_ref, bi_ref,
               wo_ref, go_ref, bo_ref,
               wdp_ref, wdb_ref, gd_ref, bd_ref,
               o_ref, taps_ref):
        # Batch slabs onto the lane axis: (C, M) with flat m = n*H*W + h*W + w.
        x_t = jnp.concatenate([x_ref[b] for b in range(n_batch)], axis=1)
        prev_t = jnp.concatenate([prev_ref[b] for b in range(n_batch)], axis=1)

        # --- ConvBranch.inp_conv1: 1x1 conv -> BN -> ReLU --------------------
        h1 = jnp.dot(wi_ref[...], x_t, preferred_element_type=jnp.float32)
        h1 = jnp.maximum(batchnorm(h1, gi_ref, bi_ref), 0.0)        # (Cmid, M)

        # --- ConvBranch.out_conv: 3x3 conv (zero pad) -> BN -> ReLU ----------
        # Taps = lane-rolled copies of h1, zeroed where the 3x3 window falls in
        # the zero padding / crosses an image boundary. Stacked along the
        # contraction axis in VMEM so the conv is ONE MXU matmul with K=9*Cmid.
        t = 0
        for di in (-1, 0, 1):
            for dj in (-1, 0, 1):
                shift = di * width + dj
                tap = h1 if shift == 0 else pltpu.roll(
                    h1, shift=(-shift) % m, axis=1)
                taps_ref[pl.ds(t * c_mid, c_mid), :] = (
                    tap * mask_ref[pl.ds(t, 1), :])
                t += 1
        h2 = jnp.dot(wo_ref[...], taps_ref[...],
                     preferred_element_type=jnp.float32)            # (Cout, M)
        h2 = jnp.maximum(batchnorm(h2, go_ref, bo_ref), 0.0)

        # --- skip concat + dim_reduc: 1x1 conv -> ReLU -> BN -----------------
        # concat([prev, branch]) @ w_dr == prev @ w_dr[:Cs] + branch @ w_dr[Cs:]
        h3 = (jnp.dot(wdp_ref[...], prev_t, preferred_element_type=jnp.float32)
              + jnp.dot(wdb_ref[...], h2, preferred_element_type=jnp.float32))
        h3 = jnp.maximum(h3, 0.0)
        y = batchnorm(h3, gd_ref, bd_ref)                           # (Cdr, M)

        # Write out per batch slab (lane slices at HW boundaries).
        for b in range(n_batch):
            o_ref[b] = y[:, b * hw:(b + 1) * hw]

    return kernel


def _full_block(shape):
    nd = len(shape)
    return pl.BlockSpec(shape, lambda *_, _nd=nd: (0,) * _nd)


# ----------------------------------------------------------------------------
# FixedLayer forward (layer_type=0, skip_indices=[1]). Public layout is NCHW.
# ----------------------------------------------------------------------------
def fixed_layer_forward(x_nchw, prev_layers_nchw, skip_indices, params):
    n, c_in, h, w = x_nchw.shape
    hw, m = h * w, n * h * w
    f32 = jnp.float32

    # Skip connections: prev layers with skip==1, concatenated BEFORE the branch
    # output (matches torch.cat(res_layers + [out], dim=1)).
    skips = [p for p, s in zip(prev_layers_nchw, skip_indices) if int(s) == 1]
    prev = skips[0] if len(skips) == 1 else jnp.concatenate(skips, axis=1)
    c_skip = prev.shape[1]

    w_inp = params["w_inp"]            # HWIO (1, 1, Cin,  Cmid)
    w_out = params["w_out"]            # HWIO (3, 3, Cmid, Cout)
    w_dr = params["w_dr"]              # HWIO (1, 1, Cskip+Cout, Cdr)
    c_mid, c_out, c_dr = w_inp.shape[-1], w_out.shape[-1], w_dr.shape[-1]

    # NCHW -> (N, C, H*W) is a free reshape; no HBM transpose in the layer path.
    x3 = x_nchw.reshape(n, c_in, hw).astype(f32)
    p3 = prev.reshape(n, c_skip, hw).astype(f32)
    masks = jnp.asarray(_tap_masks(n, h, w))                            # (9, M)

    # Weights in transposed (Cout, K) form; the 9 conv taps folded along K.
    wi_t = jnp.transpose(w_inp[0, 0]).astype(f32)                       # (Cmid, Cin)
    wo_t = jnp.transpose(w_out.reshape(9 * c_mid, c_out)).astype(f32)   # (Cout, 9*Cmid)
    wdr2 = w_dr[0, 0].astype(f32)                                       # (Cskip+Cout, Cdr)
    wdp_t = jnp.transpose(wdr2[:c_skip])                                # (Cdr, Cskip)
    wdb_t = jnp.transpose(wdr2[c_skip:])                                # (Cdr, Cout)

    col = lambda v: v.reshape(-1, 1).astype(f32)
    operands = (x3, p3, masks,
                wi_t, col(params["g_inp"]), col(params["b_inp"]),
                wo_t, col(params["g_out"]), col(params["b_out"]),
                wdp_t, wdb_t, col(params["g_dr"]), col(params["b_dr"]))

    flops = 2 * m * (c_in * c_mid + 9 * c_mid * c_out + (c_skip + c_out) * c_dr)
    bytes_accessed = sum(int(a.size) * 4 for a in operands) + n * c_dr * hw * 4

    kernel = _make_fixed_layer_kernel(n, h, w, c_mid)
    out = pl.pallas_call(
        kernel,
        out_shape=jax.ShapeDtypeStruct((n, c_dr, hw), f32),
        grid_spec=pltpu.PrefetchScalarGridSpec(
            num_scalar_prefetch=0,
            grid=(1,),
            in_specs=[_full_block(a.shape) for a in operands],
            out_specs=_full_block((n, c_dr, hw)),
            scratch_shapes=[pltpu.VMEM((9 * c_mid, m), jnp.float32)],
        ),
        compiler_params=pltpu.CompilerParams(
            dimension_semantics=("arbitrary",)),
        cost_estimate=pl.CostEstimate(
            flops=int(flops),
            transcendentals=int(c_mid + c_out + c_dr),
            bytes_accessed=int(bytes_accessed)),
    )(*operands)

    return out.reshape(n, c_dr, h, w)   # (N, Cdr, H, W) == NCHW


# ----------------------------------------------------------------------------
# Pure-JAX reference (correctness check only).
# ----------------------------------------------------------------------------
def _ref_conv(x_nhwc, w_hwio):
    return jax.lax.conv_general_dilated(
        x_nhwc, w_hwio, window_strides=(1, 1), padding="SAME",
        dimension_numbers=("NHWC", "HWIO", "NHWC"))


def _ref_bn(y, g, b, eps=BN_EPS):
    mean = jnp.mean(y, axis=(0, 1, 2), keepdims=True)
    var = jnp.mean((y - mean) ** 2, axis=(0, 1, 2), keepdims=True)
    return g * (y - mean) / jnp.sqrt(var + eps) + b


def reference_forward(x_nchw, prev_layers_nchw, skip_indices, params):
    x = jnp.transpose(x_nchw, (0, 2, 3, 1))
    h = jnp.maximum(_ref_bn(_ref_conv(x, params["w_inp"]),
                            params["g_inp"], params["b_inp"]), 0.0)
    h = jnp.maximum(_ref_bn(_ref_conv(h, params["w_out"]),
                            params["g_out"], params["b_out"]), 0.0)
    res = [jnp.transpose(p, (0, 2, 3, 1))
           for p, s in zip(prev_layers_nchw, skip_indices) if int(s) == 1]
    cat = jnp.concatenate(res + [h], axis=-1)
    o = jnp.maximum(_ref_conv(cat, params["w_dr"]), 0.0)
    o = _ref_bn(o, params["g_dr"], params["b_dr"])
    return jnp.transpose(o, (0, 3, 1, 2))


if __name__ == "__main__":
    # Small shapes: batch=2, in_planes=out_planes=8, spatial=16x16.
    N, C, H, W = 2, 8, 16, 16
    skip_indices = [1]                      # layer_id=1, one skip connection
    n_skip = sum(skip_indices)
    C_cat = (n_skip + 1) * C                # dim_reduc input channels

    key = jax.random.PRNGKey(0)
    ks = jax.random.split(key, 10)
    params = {
        # weights stored HWIO (kh, kw, Cin, Cout)
        "w_inp": 0.2 * jax.random.normal(ks[0], (1, 1, C, C), jnp.float32),
        "g_inp": 1.0 + 0.1 * jax.random.normal(ks[1], (C,), jnp.float32),
        "b_inp": 0.1 * jax.random.normal(ks[2], (C,), jnp.float32),
        "w_out": 0.2 * jax.random.normal(ks[3], (3, 3, C, C), jnp.float32),
        "g_out": 1.0 + 0.1 * jax.random.normal(ks[4], (C,), jnp.float32),
        "b_out": 0.1 * jax.random.normal(ks[5], (C,), jnp.float32),
        "w_dr": 0.2 * jax.random.normal(ks[6], (1, 1, C_cat, C), jnp.float32),
        "g_dr": 1.0 + 0.1 * jax.random.normal(ks[7], (C,), jnp.float32),
        "b_dr": 0.1 * jax.random.normal(ks[8], (C,), jnp.float32),
    }

    kx, kp = jax.random.split(ks[9])
    x = jax.random.normal(kx, (N, C, H, W), jnp.float32)          # NCHW input
    prev0 = jax.random.normal(kp, (N, C, H, W), jnp.float32)      # prev layer 0
    prev_layers = [prev0]

    fwd = jax.jit(functools.partial(fixed_layer_forward,
                                    skip_indices=skip_indices, params=params))
    out = jax.block_until_ready(fwd(x, prev_layers))

    ref = jax.block_until_ready(
        reference_forward(x, prev_layers, skip_indices, params))

    assert out.shape == (N, C, H, W), out.shape
    max_err = float(jnp.max(jnp.abs(out - ref)))
    assert max_err < 2e-3, f"mismatch vs reference: {max_err}"

    print("KERNEL_OK")
</pallas_src>

<mosaic_0001>
module attributes {stable_mosaic.version = 11 : i64} {
  func.func @kernel(%arg0: i32, %arg1: memref<2x8x256xf32, #tpu.memory_space<vmem>>, %arg2: memref<2x8x256xf32, #tpu.memory_space<vmem>>, %arg3: memref<9x512xf32, #tpu.memory_space<vmem>>, %arg4: memref<8x8xf32, #tpu.memory_space<vmem>>, %arg5: memref<8x1xf32, #tpu.memory_space<vmem>>, %arg6: memref<8x1xf32, #tpu.memory_space<vmem>>, %arg7: memref<8x72xf32, #tpu.memory_space<vmem>>, %arg8: memref<8x1xf32, #tpu.memory_space<vmem>>, %arg9: memref<8x1xf32, #tpu.memory_space<vmem>>, %arg10: memref<8x8xf32, #tpu.memory_space<vmem>>, %arg11: memref<8x8xf32, #tpu.memory_space<vmem>>, %arg12: memref<8x1xf32, #tpu.memory_space<vmem>>, %arg13: memref<8x1xf32, #tpu.memory_space<vmem>>, %arg14: memref<2x8x256xf32, #tpu.memory_space<vmem>>, %arg15: memref<72x512xf32, #tpu.memory_space<vmem>>) attributes {dimension_semantics = [#tpu.dimension_semantics<arbitrary>], iteration_bounds = array<i64: 1>, scalar_prefetch = 0 : i64, scratch_operands = 1 : i64, tpu.core_type = #tpu.core_type<tc>, window_params = [{pipeline_mode = #tpu.pipeline_mode<synchronous>, transform_indices = @transform_0, window_bounds = array<i64: 2, 8, 256>}, {pipeline_mode = #tpu.pipeline_mode<synchronous>, transform_indices = @transform_1, window_bounds = array<i64: 2, 8, 256>}, {pipeline_mode = #tpu.pipeline_mode<synchronous>, transform_indices = @transform_2, window_bounds = array<i64: 9, 512>}, {pipeline_mode = #tpu.pipeline_mode<synchronous>, transform_indices = @transform_3, window_bounds = array<i64: 8, 8>}, {pipeline_mode = #tpu.pipeline_mode<synchronous>, transform_indices = @transform_4, window_bounds = array<i64: 8, 1>}, {pipeline_mode = #tpu.pipeline_mode<synchronous>, transform_indices = @transform_5, window_bounds = array<i64: 8, 1>}, {pipeline_mode = #tpu.pipeline_mode<synchronous>, transform_indices = @transform_6, window_bounds = array<i64: 8, 72>}, {pipeline_mode = #tpu.pipeline_mode<synchronous>, transform_indices = @transform_7, window_bounds = array<i64: 8, 1>}, {pipeline_mode = #tpu.pipeline_mode<synchronous>, transform_indices = @transform_8, window_bounds = array<i64: 8, 1>}, {pipeline_mode = #tpu.pipeline_mode<synchronous>, transform_indices = @transform_9, window_bounds = array<i64: 8, 8>}, {pipeline_mode = #tpu.pipeline_mode<synchronous>, transform_indices = @transform_10, window_bounds = array<i64: 8, 8>}, {pipeline_mode = #tpu.pipeline_mode<synchronous>, transform_indices = @transform_11, window_bounds = array<i64: 8, 1>}, {pipeline_mode = #tpu.pipeline_mode<synchronous>, transform_indices = @transform_12, window_bounds = array<i64: 8, 1>}, {pipeline_mode = #tpu.pipeline_mode<synchronous>, transform_indices = @transform_13, window_bounds = array<i64: 2, 8, 256>}]} {
    %c0 = arith.constant 0 : index
    %c0_0 = arith.constant 0 : index
    %c0_1 = arith.constant 0 : index
    %0 = vector.load %arg1[%c0, %c0_0, %c0_1] : memref<2x8x256xf32, #tpu.memory_space<vmem>>, vector<1x8x256xf32>
    %1 = vector.shape_cast %0 : vector<1x8x256xf32> to vector<8x256xf32>
    %c1 = arith.constant 1 : index
    %c0_2 = arith.constant 0 : index
    %c0_3 = arith.constant 0 : index
    %2 = vector.load %arg1[%c1, %c0_2, %c0_3] : memref<2x8x256xf32, #tpu.memory_space<vmem>>, vector<1x8x256xf32>
    %3 = vector.shape_cast %2 : vector<1x8x256xf32> to vector<8x256xf32>
    %4 = tpu.concatenate %1, %3 in 1 : vector<8x256xf32>, vector<8x256xf32> -> vector<8x512xf32>
    %c0_4 = arith.constant 0 : index
    %c0_5 = arith.constant 0 : index
    %c0_6 = arith.constant 0 : index
    %5 = vector.load %arg2[%c0_4, %c0_5, %c0_6] : memref<2x8x256xf32, #tpu.memory_space<vmem>>, vector<1x8x256xf32>
    %6 = vector.shape_cast %5 : vector<1x8x256xf32> to vector<8x256xf32>
    %c1_7 = arith.constant 1 : index
    %c0_8 = arith.constant 0 : index
    %c0_9 = arith.constant 0 : index
    %7 = vector.load %arg2[%c1_7, %c0_8, %c0_9] : memref<2x8x256xf32, #tpu.memory_space<vmem>>, vector<1x8x256xf32>
    %8 = vector.shape_cast %7 : vector<1x8x256xf32> to vector<8x256xf32>
    %9 = tpu.concatenate %6, %8 in 1 : vector<8x256xf32>, vector<8x256xf32> -> vector<8x512xf32>
    %c0_10 = arith.constant 0 : index
    %c0_11 = arith.constant 0 : index
    %10 = vector.load %arg4[%c0_10, %c0_11] : memref<8x8xf32, #tpu.memory_space<vmem>>, vector<8x8xf32>
    %cst = arith.constant dense<0.000000e+00> : vector<8x512xf32>
    %11 = tpu.matmul %10, %4, %cst {dimension_numbers = #tpu.dot_dimension_numbers<[1], [0], [0], [1], [0, 0, 1, 1], [], []>} : vector<8x8xf32>, vector<8x512xf32>, vector<8x512xf32> -> vector<8x512xf32>
    %cst_12 = arith.constant dense<0.000000e+00> : vector<8xf32>
    %12 = vector.multi_reduction <add>, %11, %cst_12 [1] : vector<8x512xf32> to vector<8xf32>
    %13 = vector.shape_cast %12 : vector<8xf32> to vector<8x1xf32>
    %cst_13 = arith.constant 0.001953125 : f32
    %14 = vector.broadcast %cst_13 : f32 to vector<8x1xf32>
    %15 = arith.mulf %13, %14 : vector<8x1xf32>
    %16 = vector.broadcast %15 : vector<8x1xf32> to vector<8x512xf32>
    %17 = arith.subf %11, %16 : vector<8x512xf32>
    %18 = arith.mulf %17, %17 : vector<8x512xf32>
    %cst_14 = arith.constant dense<0.000000e+00> : vector<8xf32>
    %19 = vector.multi_reduction <add>, %18, %cst_14 [1] : vector<8x512xf32> to vector<8xf32>
    %20 = vector.shape_cast %19 : vector<8xf32> to vector<8x1xf32>
    %cst_15 = arith.constant 0.001953125 : f32
    %21 = vector.broadcast %cst_15 : f32 to vector<8x1xf32>
    %22 = arith.mulf %20, %21 : vector<8x1xf32>
    %c0_16 = arith.constant 0 : index
    %c0_17 = arith.constant 0 : index
    %23 = vector.load %arg5[%c0_16, %c0_17] : memref<8x1xf32, #tpu.memory_space<vmem>>, vector<8x1xf32>
    %24 = vector.broadcast %23 : vector<8x1xf32> to vector<8x512xf32>
    %25 = arith.mulf %24, %17 : vector<8x512xf32>
    %cst_18 = arith.constant 9.99999974E-6 : f32
    %26 = vector.broadcast %cst_18 : f32 to vector<8x1xf32>
    %27 = arith.addf %22, %26 : vector<8x1xf32>
    %28 = math.rsqrt %27 : vector<8x1xf32>
    %29 = vector.broadcast %28 : vector<8x1xf32> to vector<8x512xf32>
    %30 = arith.mulf %25, %29 : vector<8x512xf32>
    %c0_19 = arith.constant 0 : index
    %c0_20 = arith.constant 0 : index
    %31 = vector.load %arg6[%c0_19, %c0_20] : memref<8x1xf32, #tpu.memory_space<vmem>>, vector<8x1xf32>
    %32 = vector.broadcast %31 : vector<8x1xf32> to vector<8x512xf32>
    %33 = arith.addf %30, %32 : vector<8x512xf32>
    %cst_21 = arith.constant 0.000000e+00 : f32
    %34 = vector.broadcast %cst_21 : f32 to vector<8x512xf32>
    %35 = arith.maximumf %33, %34 : vector<8x512xf32>
    %c17_i32 = arith.constant 17 : i32
    %36 = tpu.dynamic_rotate %35 by %c17_i32 dim 1 : vector<8x512xf32>, i32 -> vector<8x512xf32>
    %c0_22 = arith.constant 0 : index
    %c0_23 = arith.constant 0 : index
    %37 = vector.load %arg3[%c0_22, %c0_23] : memref<9x512xf32, #tpu.memory_space<vmem>>, vector<1x512xf32>
    %38 = vector.broadcast %37 : vector<1x512xf32> to vector<8x512xf32>
    %39 = arith.mulf %36, %38 : vector<8x512xf32>
    %c0_24 = arith.constant 0 : index
    %c0_25 = arith.constant 0 : index
    %40 = vector.load %arg15[%c0_24, %c0_25] : memref<72x512xf32, #tpu.memory_space<vmem>>, vector<8x512xf32>
    tpu.vector_store %arg15[%c0_24, %c0_25], %39 {strides = array<i32>} : memref<72x512xf32, #tpu.memory_space<vmem>>, vector<8x512xf32>,
    %c16_i32 = arith.constant 16 : i32
    %41 = tpu.dynamic_rotate %35 by %c16_i32 dim 1 : vector<8x512xf32>, i32 -> vector<8x512xf32>
    %c1_26 = arith.constant 1 : index
    %c0_27 = arith.constant 0 : index
    %42 = vector.load %arg3[%c1_26, %c0_27] : memref<9x512xf32, #tpu.memory_space<vmem>>, vector<1x512xf32>
    %43 = vector.broadcast %42 : vector<1x512xf32> to vector<8x512xf32>
    %44 = arith.mulf %41, %43 : vector<8x512xf32>
    %c8 = arith.constant 8 : index
    %c0_28 = arith.constant 0 : index
    %45 = vector.load %arg15[%c8, %c0_28] : memref<72x512xf32, #tpu.memory_space<vmem>>, vector<8x512xf32>
    tpu.vector_store %arg15[%c8, %c0_28], %44 {strides = array<i32>} : memref<72x512xf32, #tpu.memory_space<vmem>>, vector<8x512xf32>,
    %c15_i32 = arith.constant 15 : i32
    %46 = tpu.dynamic_rotate %35 by %c15_i32 dim 1 : vector<8x512xf32>, i32 -> vector<8x512xf32>
    %c2 = arith.constant 2 : index
    %c0_29 = arith.constant 0 : index
    %47 = vector.load %arg3[%c2, %c0_29] : memref<9x512xf32, #tpu.memory_space<vmem>>, vector<1x512xf32>
    %48 = vector.broadcast %47 : vector<1x512xf32> to vector<8x512xf32>
    %49 = arith.mulf %46, %48 : vector<8x512xf32>
    %c16 = arith.constant 16 : index
    %c0_30 = arith.constant 0 : index
    %50 = vector.load %arg15[%c16, %c0_30] : memref<72x512xf32, #tpu.memory_space<vmem>>, vector<8x512xf32>
    tpu.vector_store %arg15[%c16, %c0_30], %49 {strides = array<i32>} : memref<72x512xf32, #tpu.memory_space<vmem>>, vector<8x512xf32>,
    %c1_i32 = arith.constant 1 : i32
    %51 = tpu.dynamic_rotate %35 by %c1_i32 dim 1 : vector<8x512xf32>, i32 -> vector<8x512xf32>
    %c3 = arith.constant 3 : index
    %c0_31 = arith.constant 0 : index
    %52 = vector.load %arg3[%c3, %c0_31] : memref<9x512xf32, #tpu.memory_space<vmem>>, vector<1x512xf32>
    %53 = vector.broadcast %52 : vector<1x512xf32> to vector<8x512xf32>
    %54 = arith.mulf %51, %53 : vector<8x512xf32>
    %c24 = arith.constant 24 : index
    %c0_32 = arith.constant 0 : index
    %55 = vector.load %arg15[%c24, %c0_32] : memref<72x512xf32, #tpu.memory_space<vmem>>, vector<8x512xf32>
    tpu.vector_store %arg15[%c24, %c0_32], %54 {strides = array<i32>} : memref<72x512xf32, #tpu.memory_space<vmem>>, vector<8x512xf32>,
    %c4 = arith.constant 4 : index
    %c0_33 = arith.constant 0 : index
    %56 = vector.load %arg3[%c4, %c0_33] : memref<9x512xf32, #tpu.memory_space<vmem>>, vector<1x512xf32>
    %57 = vector.broadcast %56 : vector<1x512xf32> to vector<8x512xf32>
    %58 = arith.mulf %35, %57 : vector<8x512xf32>
    %c32 = arith.constant 32 : index
    %c0_34 = arith.constant 0 : index
    %59 = vector.load %arg15[%c32, %c0_34] : memref<72x512xf32, #tpu.memory_space<vmem>>, vector<8x512xf32>
    tpu.vector_store %arg15[%c32, %c0_34], %58 {strides = array<i32>} : memref<72x512xf32, #tpu.memory_space<vmem>>, vector<8x512xf32>,
    %c511_i32 = arith.constant 511 : i32
    %60 = tpu.dynamic_rotate %35 by %c511_i32 dim 1 : vector<8x512xf32>, i32 -> vector<8x512xf32>
    %c5 = arith.constant 5 : index
    %c0_35 = arith.constant 0 : index
    %61 = vector.load %arg3[%c5, %c0_35] : memref<9x512xf32, #tpu.memory_space<vmem>>, vector<1x512xf32>
    %62 = vector.broadcast %61 : vector<1x512xf32> to vector<8x512xf32>
    %63 = arith.mulf %60, %62 : vector<8x512xf32>
    %c40 = arith.constant 40 : index
    %c0_36 = arith.constant 0 : index
    %64 = vector.load %arg15[%c40, %c0_36] : memref<72x512xf32, #tpu.memory_space<vmem>>, vector<8x512xf32>
    tpu.vector_store %arg15[%c40, %c0_36], %63 {strides = array<i32>} : memref<72x512xf32, #tpu.memory_space<vmem>>, vector<8x512xf32>,
    %c497_i32 = arith.constant 497 : i32
    %65 = tpu.dynamic_rotate %35 by %c497_i32 dim 1 : vector<8x512xf32>, i32 -> vector<8x512xf32>
    %c6 = arith.constant 6 : index
    %c0_37 = arith.constant 0 : index
    %66 = vector.load %arg3[%c6, %c0_37] : memref<9x512xf32, #tpu.memory_space<vmem>>, vector<1x512xf32>
    %67 = vector.broadcast %66 : vector<1x512xf32> to vector<8x512xf32>
    %68 = arith.mulf %65, %67 : vector<8x512xf32>
    %c48 = arith.constant 48 : index
    %c0_38 = arith.constant 0 : index
    %69 = vector.load %arg15[%c48, %c0_38] : memref<72x512xf32, #tpu.memory_space<vmem>>, vector<8x512xf32>
    tpu.vector_store %arg15[%c48, %c0_38], %68 {strides = array<i32>} : memref<72x512xf32, #tpu.memory_space<vmem>>, vector<8x512xf32>,
    %c496_i32 = arith.constant 496 : i32
    %70 = tpu.dynamic_rotate %35 by %c496_i32 dim 1 : vector<8x512xf32>, i32 -> vector<8x512xf32>
    %c7 = arith.constant 7 : index
    %c0_39 = arith.constant 0 : index
    %71 = vector.load %arg3[%c7, %c0_39] : memref<9x512xf32, #tpu.memory_space<vmem>>, vector<1x512xf32>
    %72 = vector.broadcast %71 : vector<1x512xf32> to vector<8x512xf32>
    %73 = arith.mulf %70, %72 : vector<8x512xf32>
    %c56 = arith.constant 56 : index
    %c0_40 = arith.constant 0 : index
    %74 = vector.load %arg15[%c56, %c0_40] : memref<72x512xf32, #tpu.memory_space<vmem>>, vector<8x512xf32>
    tpu.vector_store %arg15[%c56, %c0_40], %73 {strides = array<i32>} : memref<72x512xf32, #tpu.memory_space<vmem>>, vector<8x512xf32>,
    %c495_i32 = arith.constant 495 : i32
    %75 = tpu.dynamic_rotate %35 by %c495_i32 dim 1 : vector<8x512xf32>, i32 -> vector<8x512xf32>
    %c8_41 = arith.constant 8 : index
    %c0_42 = arith.constant 0 : index
    %76 = vector.load %arg3[%c8_41, %c0_42] : memref<9x512xf32, #tpu.memory_space<vmem>>, vector<1x512xf32>
    %77 = vector.broadcast %76 : vector<1x512xf32> to vector<8x512xf32>
    %78 = arith.mulf %75, %77 : vector<8x512xf32>
    %c64 = arith.constant 64 : index
    %c0_43 = arith.constant 0 : index
    %79 = vector.load %arg15[%c64, %c0_43] : memref<72x512xf32, #tpu.memory_space<vmem>>, vector<8x512xf32>
    tpu.vector_store %arg15[%c64, %c0_43], %78 {strides = array<i32>} : memref<72x512xf32, #tpu.memory_space<vmem>>, vector<8x512xf32>,
    %c0_44 = arith.constant 0 : index
    %c0_45 = arith.constant 0 : index
    %80 = vector.load %arg7[%c0_44, %c0_45] : memref<8x72xf32, #tpu.memory_space<vmem>>, vector<8x72xf32>
    %c0_46 = arith.constant 0 : index
    %c0_47 = arith.constant 0 : index
    %81 = vector.load %arg15[%c0_46, %c0_47] : memref<72x512xf32, #tpu.memory_space<vmem>>, vector<72x512xf32>
    %cst_48 = arith.constant dense<0.000000e+00> : vector<8x512xf32>
    %82 = tpu.matmul %80, %81, %cst_48 {dimension_numbers = #tpu.dot_dimension_numbers<[1], [0], [0], [1], [0, 0, 1, 1], [], []>} : vector<8x72xf32>, vector<72x512xf32>, vector<8x512xf32> -> vector<8x512xf32>
    %cst_49 = arith.constant dense<0.000000e+00> : vector<8xf32>
    %83 = vector.multi_reduction <add>, %82, %cst_49 [1] : vector<8x512xf32> to vector<8xf32>
    %84 = vector.shape_cast %83 : vector<8xf32> to vector<8x1xf32>
    %cst_50 = arith.constant 0.001953125 : f32
    %85 = vector.broadcast %cst_50 : f32 to vector<8x1xf32>
    %86 = arith.mulf %84, %85 : vector<8x1xf32>
    %87 = vector.broadcast %86 : vector<8x1xf32> to vector<8x512xf32>
    %88 = arith.subf %82, %87 : vector<8x512xf32>
    %89 = arith.mulf %88, %88 : vector<8x512xf32>
    %cst_51 = arith.constant dense<0.000000e+00> : vector<8xf32>
    %90 = vector.multi_reduction <add>, %89, %cst_51 [1] : vector<8x512xf32> to vector<8xf32>
    %91 = vector.shape_cast %90 : vector<8xf32> to vector<8x1xf32>
    %cst_52 = arith.constant 0.001953125 : f32
    %92 = vector.broadcast %cst_52 : f32 to vector<8x1xf32>
    %93 = arith.mulf %91, %92 : vector<8x1xf32>
    %c0_53 = arith.constant 0 : index
    %c0_54 = arith.constant 0 : index
    %94 = vector.load %arg8[%c0_53, %c0_54] : memref<8x1xf32, #tpu.memory_space<vmem>>, vector<8x1xf32>
    %95 = vector.broadcast %94 : vector<8x1xf32> to vector<8x512xf32>
    %96 = arith.mulf %95, %88 : vector<8x512xf32>
    %cst_55 = arith.constant 9.99999974E-6 : f32
    %97 = vector.broadcast %cst_55 : f32 to vector<8x1xf32>
    %98 = arith.addf %93, %97 : vector<8x1xf32>
    %99 = math.rsqrt %98 : vector<8x1xf32>
    %100 = vector.broadcast %99 : vector<8x1xf32> to vector<8x512xf32>
    %101 = arith.mulf %96, %100 : vector<8x512xf32>
    %c0_56 = arith.constant 0 : index
    %c0_57 = arith.constant 0 : index
    %102 = vector.load %arg9[%c0_56, %c0_57] : memref<8x1xf32, #tpu.memory_space<vmem>>, vector<8x1xf32>
    %103 = vector.broadcast %102 : vector<8x1xf32> to vector<8x512xf32>
    %104 = arith.addf %101, %103 : vector<8x512xf32>
    %cst_58 = arith.constant 0.000000e+00 : f32
    %105 = vector.broadcast %cst_58 : f32 to vector<8x512xf32>
    %106 = arith.maximumf %104, %105 : vector<8x512xf32>
    %c0_59 = arith.constant 0 : index
    %c0_60 = arith.constant 0 : index
    %107 = vector.load %arg10[%c0_59, %c0_60] : memref<8x8xf32, #tpu.memory_space<vmem>>, vector<8x8xf32>
    %cst_61 = arith.constant dense<0.000000e+00> : vector<8x512xf32>
    %108 = tpu.matmul %107, %9, %cst_61 {dimension_numbers = #tpu.dot_dimension_numbers<[1], [0], [0], [1], [0, 0, 1, 1], [], []>} : vector<8x8xf32>, vector<8x512xf32>, vector<8x512xf32> -> vector<8x512xf32>
    %c0_62 = arith.constant 0 : index
    %c0_63 = arith.constant 0 : index
    %109 = vector.load %arg11[%c0_62, %c0_63] : memref<8x8xf32, #tpu.memory_space<vmem>>, vector<8x8xf32>
    %cst_64 = arith.constant dense<0.000000e+00> : vector<8x512xf32>
    %110 = tpu.matmul %109, %106, %cst_64 {dimension_numbers = #tpu.dot_dimension_numbers<[1], [0], [0], [1], [0, 0, 1, 1], [], []>} : vector<8x8xf32>, vector<8x512xf32>, vector<8x512xf32> -> vector<8x512xf32>
    %111 = arith.addf %108, %110 : vector<8x512xf32>
    %cst_65 = arith.constant 0.000000e+00 : f32
    %112 = vector.broadcast %cst_65 : f32 to vector<8x512xf32>
    %113 = arith.maximumf %111, %112 : vector<8x512xf32>
    %cst_66 = arith.constant dense<0.000000e+00> : vector<8xf32>
    %114 = vector.multi_reduction <add>, %113, %cst_66 [1] : vector<8x512xf32> to vector<8xf32>
    %115 = vector.shape_cast %114 : vector<8xf32> to vector<8x1xf32>
    %cst_67 = arith.constant 0.001953125 : f32
    %116 = vector.broadcast %cst_67 : f32 to vector<8x1xf32>
    %117 = arith.mulf %115, %116 : vector<8x1xf32>
    %118 = vector.broadcast %117 : vector<8x1xf32> to vector<8x512xf32>
    %119 = arith.subf %113, %118 : vector<8x512xf32>
    %120 = arith.mulf %119, %119 : vector<8x512xf32>
    %cst_68 = arith.constant dense<0.000000e+00> : vector<8xf32>
    %121 = vector.multi_reduction <add>, %120, %cst_68 [1] : vector<8x512xf32> to vector<8xf32>
    %122 = vector.shape_cast %121 : vector<8xf32> to vector<8x1xf32>
    %cst_69 = arith.constant 0.001953125 : f32
    %123 = vector.broadcast %cst_69 : f32 to vector<8x1xf32>
    %124 = arith.mulf %122, %123 : vector<8x1xf32>
    %c0_70 = arith.constant 0 : index
    %c0_71 = arith.constant 0 : index
    %125 = vector.load %arg12[%c0_70, %c0_71] : memref<8x1xf32, #tpu.memory_space<vmem>>, vector<8x1xf32>
    %126 = vector.broadcast %125 : vector<8x1xf32> to vector<8x512xf32>
    %127 = arith.mulf %126, %119 : vector<8x512xf32>
    %cst_72 = arith.constant 9.99999974E-6 : f32
    %128 = vector.broadcast %cst_72 : f32 to vector<8x1xf32>
    %129 = arith.addf %124, %128 : vector<8x1xf32>
    %130 = math.rsqrt %129 : vector<8x1xf32>
    %131 = vector.broadcast %130 : vector<8x1xf32> to vector<8x512xf32>
    %132 = arith.mulf %127, %131 : vector<8x512xf32>
    %c0_73 = arith.constant 0 : index
    %c0_74 = arith.constant 0 : index
    %133 = vector.load %arg13[%c0_73, %c0_74] : memref<8x1xf32, #tpu.memory_space<vmem>>, vector<8x1xf32>
    %134 = vector.broadcast %133 : vector<8x1xf32> to vector<8x512xf32>
    %135 = arith.addf %132, %134 : vector<8x512xf32>
    %136 = vector.extract_strided_slice %135 {offsets = [0, 0], sizes = [8, 256], strides = [1, 1]} : vector<8x512xf32> to vector<8x256xf32>
    %c0_75 = arith.constant 0 : index
    %c0_76 = arith.constant 0 : index
    %c0_77 = arith.constant 0 : index
    %137 = vector.load %arg14[%c0_75, %c0_76, %c0_77] : memref<2x8x256xf32, #tpu.memory_space<vmem>>, vector<1x8x256xf32>
    %138 = vector.shape_cast %137 : vector<1x8x256xf32> to vector<8x256xf32>
    %139 = vector.shape_cast %136 : vector<8x256xf32> to vector<1x8x256xf32>
    tpu.vector_store %arg14[%c0_75, %c0_76, %c0_77], %139 {strides = array<i32>} : memref<2x8x256xf32, #tpu.memory_space<vmem>>, vector<1x8x256xf32>,
    %140 = vector.extract_strided_slice %135 {offsets = [0, 256], sizes = [8, 256], strides = [1, 1]} : vector<8x512xf32> to vector<8x256xf32>
    %c1_78 = arith.constant 1 : index
    %c0_79 = arith.constant 0 : index
    %c0_80 = arith.constant 0 : index
    %141 = vector.load %arg14[%c1_78, %c0_79, %c0_80] : memref<2x8x256xf32, #tpu.memory_space<vmem>>, vector<1x8x256xf32>
    %142 = vector.shape_cast %141 : vector<1x8x256xf32> to vector<8x256xf32>
    %143 = vector.shape_cast %140 : vector<8x256xf32> to vector<1x8x256xf32>
    tpu.vector_store %arg14[%c1_78, %c0_79, %c0_80], %143 {strides = array<i32>} : memref<2x8x256xf32, #tpu.memory_space<vmem>>, vector<1x8x256xf32>,
    return
  }
  func.func @transform_0(%arg0: i32) -> (i32, i32, i32) {
    %c0_i32 = arith.constant 0 : i32
    %c0_i32_0 = arith.constant 0 : i32
    %c0_i32_1 = arith.constant 0 : i32
    %c0_i32_2 = arith.constant 0 : i32
    return %c0_i32, %c0_i32_0, %c0_i32_1 : i32, i32, i32
  }
  func.func @transform_1(%arg0: i32) -> (i32, i32, i32) {
    %c0_i32 = arith.constant 0 : i32
    %c0_i32_0 = arith.constant 0 : i32
    %c0_i32_1 = arith.constant 0 : i32
    %c0_i32_2 = arith.constant 0 : i32
    return %c0_i32, %c0_i32_0, %c0_i32_1 : i32, i32, i32
  }
  func.func @transform_2(%arg0: i32) -> (i32, i32) {
    %c0_i32 = arith.constant 0 : i32
    %c0_i32_0 = arith.constant 0 : i32
    %c0_i32_1 = arith.constant 0 : i32
    return %c0_i32, %c0_i32_0 : i32, i32
  }
  func.func @transform_3(%arg0: i32) -> (i32, i32) {
    %c0_i32 = arith.constant 0 : i32
    %c0_i32_0 = arith.constant 0 : i32
    %c0_i32_1 = arith.constant 0 : i32
    return %c0_i32, %c0_i32_0 : i32, i32
  }
  func.func @transform_4(%arg0: i32) -> (i32, i32) {
    %c0_i32 = arith.constant 0 : i32
    %c0_i32_0 = arith.constant 0 : i32
    %c0_i32_1 = arith.constant 0 : i32
    return %c0_i32, %c0_i32_0 : i32, i32
  }
  func.func @transform_5(%arg0: i32) -> (i32, i32) {
    %c0_i32 = arith.constant 0 : i32
    %c0_i32_0 = arith.constant 0 : i32
    %c0_i32_1 = arith.constant 0 : i32
    return %c0_i32, %c0_i32_0 : i32, i32
  }
  func.func @transform_6(%arg0: i32) -> (i32, i32) {
    %c0_i32 = arith.constant 0 : i32
    %c0_i32_0 = arith.constant 0 : i32
    %c0_i32_1 = arith.constant 0 : i32
    return %c0_i32, %c0_i32_0 : i32, i32
  }
  func.func @transform_7(%arg0: i32) -> (i32, i32) {
    %c0_i32 = arith.constant 0 : i32
    %c0_i32_0 = arith.constant 0 : i32
    %c0_i32_1 = arith.constant 0 : i32
    return %c0_i32, %c0_i32_0 : i32, i32
  }
  func.func @transform_8(%arg0: i32) -> (i32, i32) {
    %c0_i32 = arith.constant 0 : i32
    %c0_i32_0 = arith.constant 0 : i32
    %c0_i32_1 = arith.constant 0 : i32
    return %c0_i32, %c0_i32_0 : i32, i32
  }
  func.func @transform_9(%arg0: i32) -> (i32, i32) {
    %c0_i32 = arith.constant 0 : i32
    %c0_i32_0 = arith.constant 0 : i32
    %c0_i32_1 = arith.constant 0 : i32
    return %c0_i32, %c0_i32_0 : i32, i32
  }
  func.func @transform_10(%arg0: i32) -> (i32, i32) {
    %c0_i32 = arith.constant 0 : i32
    %c0_i32_0 = arith.constant 0 : i32
    %c0_i32_1 = arith.constant 0 : i32
    return %c0_i32, %c0_i32_0 : i32, i32
  }
  func.func @transform_11(%arg0: i32) -> (i32, i32) {
    %c0_i32 = arith.constant 0 : i32
    %c0_i32_0 = arith.constant 0 : i32
    %c0_i32_1 = arith.constant 0 : i32
    return %c0_i32, %c0_i32_0 : i32, i32
  }
  func.func @transform_12(%arg0: i32) -> (i32, i32) {
    %c0_i32 = arith.constant 0 : i32
    %c0_i32_0 = arith.constant 0 : i32
    %c0_i32_1 = arith.constant 0 : i32
    return %c0_i32, %c0_i32_0 : i32, i32
  }
  func.func @transform_13(%arg0: i32) -> (i32, i32, i32) {
    %c0_i32 = arith.constant 0 : i32
    %c0_i32_0 = arith.constant 0 : i32
    %c0_i32_1 = arith.constant 0 : i32
    %c0_i32_2 = arith.constant 0 : i32
    return %c0_i32, %c0_i32_0, %c0_i32_1 : i32, i32, i32
  }
}

</mosaic_0001>

<llo_original>
// kernel: fixed_layer_forward.1
$region0: #{fixed_layer_forward.1}
  #allocation0 [shape = 'u32[]', space=smem, size = 0x4, offset = 0x4, fixed_abs, tag = 'smem constant byte address 0x4 - core index']
  #allocation1 [shape = 'u32[144,128]{1,0:T(1,128)}', space=vmem, size = 0x12000, scoped, tag = 'internal scratch']
  #allocation2 [shape = 'f32[72,512]{1,0:T(8,128)}', space=vmem, size = 0x24000, scoped, tag = 'scratch operand']
  %s0 = inlined_call_operand.vmem [shape: f32[2,8,256], index: 0, kind: input, shape index: {}]
  %s1 = inlined_call_operand.vmem [shape: f32[2,8,256], index: 1, kind: input, shape index: {}]
  %s2 = inlined_call_operand.vmem [shape: f32[9,512], index: 2, kind: input, shape index: {}]
  %s3 = inlined_call_operand.vmem [shape: f32[8,8], index: 3, kind: input, shape index: {}]
  %s4 = inlined_call_operand.vmem [shape: f32[8,1], index: 4, kind: input, shape index: {}]
  %s5 = inlined_call_operand.vmem [shape: f32[8,1], index: 5, kind: input, shape index: {}]
  %s6 = inlined_call_operand.vmem [shape: f32[8,72], index: 6, kind: input, shape index: {}]
  %s7 = inlined_call_operand.vmem [shape: f32[8,1], index: 7, kind: input, shape index: {}]
  %s8 = inlined_call_operand.vmem [shape: f32[8,1], index: 8, kind: input, shape index: {}]
  %s9 = inlined_call_operand.vmem [shape: f32[8,8], index: 9, kind: input, shape index: {}]
  %s10 = inlined_call_operand.vmem [shape: f32[8,8], index: 10, kind: input, shape index: {}]
  %s11 = inlined_call_operand.vmem [shape: f32[8,1], index: 11, kind: input, shape index: {}]
  %s12 = inlined_call_operand.vmem [shape: f32[8,1], index: 12, kind: input, shape index: {}]
  %s13 = inlined_call_operand.vmem [shape: f32[2,8,256], index: 13, kind: output, shape index: {}]
  %s14 = sld [smem:[#allocation0]]
  $region62: #{fixed_layer_forward.1} parent=0
    _
  %s16 = ssub.s32 1, %s14
  %s17 = scalar_select 0, %s16, %s14
  // Predicated region
  $region2: #{fixed_layer_forward.1} parent=0 // pred_check
    _
  $region3: #{fixed_layer_forward.1} parent=0 // pred_check_branch
    %19 = sbr.rel (0) target = $region5
  $region4: #{fixed_layer_forward.1} parent=0 // pred_region
    _
  $region5: #{fixed_layer_forward.1} parent=0 // pred_fallthru
    _
  // Predicated region
  $region6: #{fixed_layer_forward.1} parent=0 // pred_check
    _
  $region7: #{fixed_layer_forward.1} parent=0 // pred_check_branch
    %21 = sbr.rel (0) target = $region9
  $region8: #{fixed_layer_forward.1} parent=0 // pred_region
    _
  $region9: #{fixed_layer_forward.1} parent=0 // pred_fallthru
    _
  // Predicated region
  $region10: #{fixed_layer_forward.1} parent=0 // pred_check
    _
  $region11: #{fixed_layer_forward.1} parent=0 // pred_check_branch
    %23 = sbr.rel (0) target = $region13
  $region12: #{fixed_layer_forward.1} parent=0 // pred_region
    _
  $region13: #{fixed_layer_forward.1} parent=0 // pred_fallthru
    _
  // Predicated region
  $region14: #{fixed_layer_forward.1} parent=0 // pred_check
    _
  $region15: #{fixed_layer_forward.1} parent=0 // pred_check_branch
    %25 = sbr.rel (0) target = $region17
  $region16: #{fixed_layer_forward.1} parent=0 // pred_region
    _
  $region17: #{fixed_layer_forward.1} parent=0 // pred_fallthru
    _
  // Predicated region
  $region18: #{fixed_layer_forward.1} parent=0 // pred_check
    _
  $region19: #{fixed_layer_forward.1} parent=0 // pred_check_branch
    %27 = sbr.rel (0) target = $region21
  $region20: #{fixed_layer_forward.1} parent=0 // pred_region
    _
  $region21: #{fixed_layer_forward.1} parent=0 // pred_fallthru
    _
  // Predicated region
  $region22: #{fixed_layer_forward.1} parent=0 // pred_check
    _
  $region23: #{fixed_layer_forward.1} parent=0 // pred_check_branch
    %29 = sbr.rel (0) target = $region25
  $region24: #{fixed_layer_forward.1} parent=0 // pred_region
    _
  $region25: #{fixed_layer_forward.1} parent=0 // pred_fallthru
    _
  // Predicated region
  $region26: #{fixed_layer_forward.1} parent=0 // pred_check
    _
  $region27: #{fixed_layer_forward.1} parent=0 // pred_check_branch
    %31 = sbr.rel (0) target = $region29
  $region28: #{fixed_layer_forward.1} parent=0 // pred_region
    _
  $region29: #{fixed_layer_forward.1} parent=0 // pred_fallthru
    _
  // Predicated region
  $region30: #{fixed_layer_forward.1} parent=0 // pred_check
    _
  $region31: #{fixed_layer_forward.1} parent=0 // pred_check_branch
    %33 = sbr.rel (0) target = $region33
  $region32: #{fixed_layer_forward.1} parent=0 // pred_region
    _
  $region33: #{fixed_layer_forward.1} parent=0 // pred_fallthru
    _
  // Predicated region
  $region34: #{fixed_layer_forward.1} parent=0 // pred_check
    _
  $region35: #{fixed_layer_forward.1} parent=0 // pred_check_branch
    %35 = sbr.rel (0) target = $region37
  $region36: #{fixed_layer_forward.1} parent=0 // pred_region
    _
  $region37: #{fixed_layer_forward.1} parent=0 // pred_fallthru
    _
  // Predicated region
  $region38: #{fixed_layer_forward.1} parent=0 // pred_check
    _
  $region39: #{fixed_layer_forward.1} parent=0 // pred_check_branch
    %37 = sbr.rel (0) target = $region41
  $region40: #{fixed_layer_forward.1} parent=0 // pred_region
    _
  $region41: #{fixed_layer_forward.1} parent=0 // pred_fallthru
    _
  // Predicated region
  $region42: #{fixed_layer_forward.1} parent=0 // pred_check
    _
  $region43: #{fixed_layer_forward.1} parent=0 // pred_check_branch
    %39 = sbr.rel (0) target = $region45
  $region44: #{fixed_layer_forward.1} parent=0 // pred_region
    _
  $region45: #{fixed_layer_forward.1} parent=0 // pred_fallthru
    _
  // Predicated region
  $region46: #{fixed_layer_forward.1} parent=0 // pred_check
    _
  $region47: #{fixed_layer_forward.1} parent=0 // pred_check_branch
    %41 = sbr.rel (0) target = $region49
  $region48: #{fixed_layer_forward.1} parent=0 // pred_region
    _
  $region49: #{fixed_layer_forward.1} parent=0 // pred_fallthru
    _
  // Predicated region
  $region50: #{fixed_layer_forward.1} parent=0 // pred_check
    _
  $region51: #{fixed_layer_forward.1} parent=0 // pred_check_branch
    %43 = sbr.rel (0) target = $region53
  $region52: #{fixed_layer_forward.1} parent=0 // pred_region
    _
  $region53: #{fixed_layer_forward.1} parent=0 // pred_fallthru
    _
  %v44 = vld [vmem:[%s0] sm:$0xff]
  %v45 = vld [vmem:[%s0 + $0x8] sm:$0xff]
  %s46 = scalar_lea.vmem %s0, 16
  %v47 = vld [vmem:[%s46] sm:$0xff]
  %v48 = vld [vmem:[%s46 + $0x8] sm:$0xff]
  %v49 = vld [vmem:[%s1] sm:$0xff]
  %v50 = vld [vmem:[%s1 + $0x8] sm:$0xff]
  %s51 = scalar_lea.vmem %s1, 16
  %v52 = vld [vmem:[%s51] sm:$0xff]
  %v53 = vld [vmem:[%s51 + $0x8] sm:$0xff]
  %v54 = vld [vmem:[%s3] sm:$0xff]
  %vm55 = vcmask 64512
  %v57 = vsel %vm55, %v54, 0
  %59 = vmatprep.subr.mxu0 0.0
  %60 = vmatpush1.msra.mxu0 0.0
  %61 = vmatprep.subr.mxu0 0.0
  %62 = vmatpush1.msra.mxu0 0.0
  %63 = vmatprep.subr.mxu0 0.0
  %64 = vmatpush1.msra.mxu0 0.0
  %65 = vmatprep.subr.mxu0 0.0
  %66 = vmatpush1.msra.mxu0 0.0
  %67 = vmatprep.subr.mxu0 0.0
  %68 = vmatpush1.msra.mxu0 0.0
  %69 = vmatprep.subr.mxu0 0.0
  %70 = vmatpush1.msra.mxu0 0.0
  %71 = vmatprep.subr.mxu0 0.0
  %72 = vmatpush1.msra.mxu0 0.0
  %73 = vmatprep.subr.mxu0 0.0
  %74 = vmatpush1.msra.mxu0 0.0
  %75 = vmatprep.subr.mxu0 0.0
  %76 = vmatpush1.msra.mxu0 0.0
  %77 = vmatprep.subr.mxu0 0.0
  %78 = vmatpush1.msra.mxu0 0.0
  %79 = vmatprep.subr.mxu0 0.0
  %80 = vmatpush1.msra.mxu0 0.0
  %81 = vmatprep.subr.mxu0 0.0
  %82 = vmatpush1.msra.mxu0 0.0
  %83 = vmatprep.subr.mxu0 0.0
  %84 = vmatpush1.msra.mxu0 0.0
  %85 = vmatprep.subr.mxu0 0.0
  %86 = vmatpush1.msra.mxu0 0.0
  %87 = vmatprep.subr.mxu0 0.0
  %88 = vmatpush1.msra.mxu0 0.0
  %89 = vmatprep.subr.mxu0 %v45
  %90 = vmatpush1.msra.mxu0 %v44
  %91 = vmatprep.subr.mxu0 0.0
  %92 = vmatpush2.msra.mxu0 0.0
  %93 = vmatprep.subr.mxu0 0.0
  %94 = vmatpush2.msra.mxu0 0.0
  %95 = vmatprep.subr.mxu0 0.0
  %96 = vmatpush2.msra.mxu0 0.0
  %97 = vmatprep.subr.mxu0 0.0
  %98 = vmatpush2.msra.mxu0 0.0
  %99 = vmatprep.subr.mxu0 0.0
  %100 = vmatpush2.msra.mxu0 0.0
  %101 = vmatprep.subr.mxu0 0.0
  %102 = vmatpush2.msra.mxu0 0.0
  %103 = vmatprep.subr.mxu0 0.0
  %104 = vmatpush2.msra.mxu0 0.0
  %105 = vmatprep.subr.mxu0 0.0
  %106 = vmatpush2.msra.mxu0 0.0
  %107 = vmatprep.subr.mxu0 0.0
  %108 = vmatpush2.msra.mxu0 0.0
  %109 = vmatprep.subr.mxu0 0.0
  %110 = vmatpush2.msra.mxu0 0.0
  %111 = vmatprep.subr.mxu0 0.0
  %112 = vmatpush2.msra.mxu0 0.0
  %113 = vmatprep.subr.mxu0 0.0
  %114 = vmatpush2.msra.mxu0 0.0
  %115 = vmatprep.subr.mxu0 0.0
  %116 = vmatpush2.msra.mxu0 0.0
  %117 = vmatprep.subr.mxu0 0.0
  %118 = vmatpush2.msra.mxu0 0.0
  %119 = vmatprep.subr.mxu0 0.0
  %120 = vmatpush2.msra.mxu0 0.0
  %121 = vmatprep.subr.mxu0 0.0
  %122 = vmatpush2.msra.mxu0 0.0
  %123 = vmatprep.mubr.f32.mxu0 0.0
  %124 = vmatmul.mubr.f32.gmra.mxu0 %v57
  %v125 = vpop.f32.mrf.mxu0
  %v126 = vadd.f32 0.0, %v125
  %v127 = vpop.f32.mrf.mxu0
  %v128 = vadd.f32 0.0, %v127
  %129 = vdwg.mxu0
  %130 = vmatprep.subr.mxu0 0.0
  %131 = vmatpush1.msra.mxu0 0.0
  %132 = vmatprep.subr.mxu0 0.0
  %133 = vmatpush1.msra.mxu0 0.0
  %134 = vmatprep.subr.mxu0 0.0
  %135 = vmatpush1.msra.mxu0 0.0
  %136 = vmatprep.subr.mxu0 0.0
  %137 = vmatpush1.msra.mxu0 0.0
  %138 = vmatprep.subr.mxu0 0.0
  %139 = vmatpush1.msra.mxu0 0.0
  %140 = vmatprep.subr.mxu0 0.0
  %141 = vmatpush1.msra.mxu0 0.0
  %142 = vmatprep.subr.mxu0 0.0
  %143 = vmatpush1.msra.mxu0 0.0
  %144 = vmatprep.subr.mxu0 0.0
  %145 = vmatpush1.msra.mxu0 0.0
  %146 = vmatprep.subr.mxu0 0.0
  %147 = vmatpush1.msra.mxu0 0.0
  %148 = vmatprep.subr.mxu0 0.0
  %149 = vmatpush1.msra.mxu0 0.0
  %150 = vmatprep.subr.mxu0 0.0
  %151 = vmatpush1.msra.mxu0 0.0
  %152 = vmatprep.subr.mxu0 0.0
  %153 = vmatpush1.msra.mxu0 0.0
  %154 = vmatprep.subr.mxu0 0.0
  %155 = vmatpush1.msra.mxu0 0.0
  %156 = vmatprep.subr.mxu0 0.0
  %157 = vmatpush1.msra.mxu0 0.0
  %158 = vmatprep.subr.mxu0 0.0
  %159 = vmatpush1.msra.mxu0 0.0
  %160 = vmatprep.subr.mxu0 %v48
  %161 = vmatpush1.msra.mxu0 %v47
  %162 = vmatprep.subr.mxu0 0.0
  %163 = vmatpush2.msra.mxu0 0.0
  %164 = vmatprep.subr.mxu0 0.0
  %165 = vmatpush2.msra.mxu0 0.0
  %166 = vmatprep.subr.mxu0 0.0
  %167 = vmatpush2.msra.mxu0 0.0
  %168 = vmatprep.subr.mxu0 0.0
  %169 = vmatpush2.msra.mxu0 0.0
  %170 = vmatprep.subr.mxu0 0.0
  %171 = vmatpush2.msra.mxu0 0.0
  %172 = vmatprep.subr.mxu0 0.0
  %173 = vmatpush2.msra.mxu0 0.0
  %174 = vmatprep.subr.mxu0 0.0
  %175 = vmatpush2.msra.mxu0 0.0
  %176 = vmatprep.subr.mxu0 0.0
  %177 = vmatpush2.msra.mxu0 0.0
  %178 = vmatprep.subr.mxu0 0.0
  %179 = vmatpush2.msra.mxu0 0.0
  %180 = vmatprep.subr.mxu0 0.0
  %181 = vmatpush2.msra.mxu0 0.0
  %182 = vmatprep.subr.mxu0 0.0
  %183 = vmatpush2.msra.mxu0 0.0
  %184 = vmatprep.subr.mxu0 0.0
  %185 = vmatpush2.msra.mxu0 0.0
  %186 = vmatprep.subr.mxu0 0.0
  %187 = vmatpush2.msra.mxu0 0.0
  %188 = vmatprep.subr.mxu0 0.0
  %189 = vmatpush2.msra.mxu0 0.0
  %190 = vmatprep.subr.mxu0 0.0
  %191 = vmatpush2.msra.mxu0 0.0
  %192 = vmatprep.subr.mxu0 0.0
  %193 = vmatpush2.msra.mxu0 0.0
  %194 = vmatprep.mubr.f32.mxu0 0.0
  %195 = vmatmul.mubr.f32.gmra.mxu0 %v57
  %v196 = vpop.f32.mrf.mxu0
  %v197 = vadd.f32 0.0, %v196
  %v198 = vpop.f32.mrf.mxu0
  %v199 = vadd.f32 0.0, %v198
  %200 = vdwg.mxu0
  %v201 = vadd.f32 %v126, %v128
  %v202 = vadd.f32 %v201, %v197
  %v203 = vadd.f32 %v202, %v199
  %204 = vadd.xlane.f32.xlu0 %v203
  %v205 = vpop.xlane.xlu0 %204
  %v206 = vmul.f32 %v205, 0.001953125
  %v207 = vsub.f32 %v126, %v206
  %v208 = vsub.f32 %v128, %v206
  %v209 = vsub.f32 %v197, %v206
  %v210 = vsub.f32 %v199, %v206
  %v211 = vmul.f32 %v207, %v207
  %v212 = vmul.f32 %v208, %v208
  %v213 = vmul.f32 %v209, %v209
  %v214 = vmul.f32 %v210, %v210
  %v215 = vadd.f32 %v211, %v212
  %v216 = vadd.f32 %v215, %v213
  %v217 = vadd.f32 %v216, %v214
  %218 = vadd.xlane.f32.xlu0 %v217
  %v219 = vpop.xlane.xlu0 %218
  %v220 = vmul.f32 %v219, 0.001953125
  %v221 = vld [vmem:[%s4] sm:$0xff]
  %223 = vset.pattern.permute.xlu0 0
  %224 = vperm.xlu0 %223, %v221
  %v225 = vpop.permute.xlu0 %224
  %v227 = vmul.f32 %v225, %v207
  %v228 = vmul.f32 %v225, %v208
  %v229 = vmul.f32 %v225, %v209
  %v230 = vmul.f32 %v225, %v210
  %v231 = vadd.f32 %v220, 1e-05
  %v232 = vrsqrt.pop %v231
  %v233 = vmul.f32 %v227, %v232
  %v234 = vmul.f32 %v228, %v232
  %v235 = vmul.f32 %v229, %v232
  %v236 = vmul.f32 %v230, %v232
  %v237 = vld [vmem:[%s5] sm:$0xff]
  %239 = vset.pattern.permute.xlu0 0
  %240 = vperm.xlu0 %239, %v237
  %v241 = vpop.permute.xlu0 %240
  %v243 = vadd.f32 %v233, %v241
  %v244 = vadd.f32 %v234, %v241
  %v245 = vadd.f32 %v235, %v241
  %v246 = vadd.f32 %v236, %v241
  %v247 = vmax.f32 %v243, 0.0
  %v248 = vmax.f32 %v244, 0.0
  %v249 = vmax.f32 %v245, 0.0
  %v250 = vmax.f32 %v246, 0.0
  %251 = vrot.lane.b32.xlu0 %v247, 17
  %v252 = vpop.permute.xlu0 %251
  %253 = vrot.lane.b32.xlu0 %v248, 17
  %v254 = vpop.permute.xlu0 %253
  %255 = vrot.lane.b32.xlu0 %v249, 17
  %v256 = vpop.permute.xlu0 %255
  %257 = vrot.lane.b32.xlu0 %v250, 17
  %v258 = vpop.permute.xlu0 %257
  %v259 = vlaneseq
  %v260 = vand.u32 %v259, 127
  %vm261 = vcmp.lt.s32.totalorder %v260, 17
  %v262 = vsel %vm261, %v256, %v258
  %v263 = vsel %vm261, %v254, %v256
  %v264 = vsel %vm261, %v252, %v254
  %v265 = vsel %vm261, %v258, %v252
  %v266 = vld [vmem:[%s2] ss:$8 sm:$0xf]
  %v268 = vlaneseq
  %v269 = vshrl.u32 %v268, 7
  %v270 = vsub.s32 0, %v269
  %v271 = vrot.slane %v266, %v270
  %v272 = vlaneseq
  %v273 = vshrl.u32 %v272, 7
  %v274 = vsub.s32 1, %v273
  %v275 = vrot.slane %v266, %v274
  %v276 = vlaneseq
  %v277 = vshrl.u32 %v276, 7
  %v278 = vsub.s32 2, %v277
  %v279 = vrot.slane %v266, %v278
  %v280 = vlaneseq
  %v281 = vshrl.u32 %v280, 7
  %v282 = vsub.s32 3, %v281
  %v283 = vrot.slane %v266, %v282
  %v288 = vmul.f32 %v265, %v271
  %v289 = vmul.f32 %v264, %v275
  %v290 = vmul.f32 %v263, %v279
  %v291 = vmul.f32 %v262, %v283
  %292 = vst [vmem:[#allocation2] sm:$0xff] %v288
  %293 = vst [vmem:[#allocation2 + $0x8] sm:$0xff] %v289
  %294 = vst [vmem:[#allocation2 + $0x10] sm:$0xff] %v290
  %295 = vst [vmem:[#allocation2 + $0x18] sm:$0xff] %v291
  %296 = vrot.lane.b32.xlu0 %v247, 16
  %v297 = vpop.permute.xlu0 %296
  %298 = vrot.lane.b32.xlu0 %v248, 16
  %v299 = vpop.permute.xlu0 %298
  %300 = vrot.lane.b32.xlu0 %v249, 16
  %v301 = vpop.permute.xlu0 %300
  %302 = vrot.lane.b32.xlu0 %v250, 16
  %v303 = vpop.permute.xlu0 %302
  %vm304 = vcmp.lt.s32.totalorder %v260, 16
  %v305 = vsel %vm304, %v301, %v303
  %v306 = vsel %vm304, %v299, %v301
  %v307 = vsel %vm304, %v297, %v299
  %v308 = vsel %vm304, %v303, %v297
  %s309 = scalar_lea.vmem %s2, 1
  %v310 = vld [vmem:[%s309] ss:$8 sm:$0xf]
  %v312 = vlaneseq
  %v313 = vshrl.u32 %v312, 7
  %v314 = vsub.s32 0, %v313
  %v315 = vrot.slane %v310, %v314
  %v316 = vlaneseq
  %v317 = vshrl.u32 %v316, 7
  %v318 = vsub.s32 1, %v317
  %v319 = vrot.slane %v310, %v318
  %v320 = vlaneseq
  %v321 = vshrl.u32 %v320, 7
  %v322 = vsub.s32 2, %v321
  %v323 = vrot.slane %v310, %v322
  %v324 = vlaneseq
  %v325 = vshrl.u32 %v324, 7
  %v326 = vsub.s32 3, %v325
  %v327 = vrot.slane %v310, %v326
  %v332 = vmul.f32 %v308, %v315
  %v333 = vmul.f32 %v307, %v319
  %v334 = vmul.f32 %v306, %v323
  %v335 = vmul.f32 %v305, %v327
  %336 = vst [vmem:[#allocation2 + $0x20] sm:$0xff] %v332
  %337 = vst [vmem:[#allocation2 + $0x28] sm:$0xff] %v333
  %338 = vst [vmem:[#allocation2 + $0x30] sm:$0xff] %v334
  %339 = vst [vmem:[#allocation2 + $0x38] sm:$0xff] %v335
  %340 = vrot.lane.b32.xlu0 %v247, 15
  %v341 = vpop.permute.xlu0 %340
  %342 = vrot.lane.b32.xlu0 %v248, 15
  %v343 = vpop.permute.xlu0 %342
  %344 = vrot.lane.b32.xlu0 %v249, 15
  %v345 = vpop.permute.xlu0 %344
  %346 = vrot.lane.b32.xlu0 %v250, 15
  %v347 = vpop.permute.xlu0 %346
  %vm348 = vcmp.lt.s32.totalorder %v260, 15
  %v349 = vsel %vm348, %v345, %v347
  %v350 = vsel %vm348, %v343, %v345
  %v351 = vsel %vm348, %v341, %v343
  %v352 = vsel %vm348, %v347, %v341
  %s353 = scalar_lea.vmem %s2, 2
  %v354 = vld [vmem:[%s353] ss:$8 sm:$0xf]
  %v356 = vlaneseq
  %v357 = vshrl.u32 %v356, 7
  %v358 = vsub.s32 0, %v357
  %v359 = vrot.slane %v354, %v358
  %v360 = vlaneseq
  %v361 = vshrl.u32 %v360, 7
  %v362 = vsub.s32 1, %v361
  %v363 = vrot.slane %v354, %v362
  %v364 = vlaneseq
  %v365 = vshrl.u32 %v364, 7
  %v366 = vsub.s32 2, %v365
  %v367 = vrot.slane %v354, %v366
  %v368 = vlaneseq
  %v369 = vshrl.u32 %v368, 7
  %v370 = vsub.s32 3, %v369
  %v371 = vrot.slane %v354, %v370
  %v376 = vmul.f32 %v352, %v359
  %v377 = vmul.f32 %v351, %v363
  %v378 = vmul.f32 %v350, %v367
  %v379 = vmul.f32 %v349, %v371
  %380 = vst [vmem:[#allocation2 + $0x40] sm:$0xff] %v376
  %381 = vst [vmem:[#allocation2 + $0x48] sm:$0xff] %v377
  %382 = vst [vmem:[#allocation2 + $0x50] sm:$0xff] %v378
  %383 = vst [vmem:[#allocation2 + $0x58] sm:$0xff] %v379
  %384 = vrot.lane.b32.xlu0 %v247, 1
  %v385 = vpop.permute.xlu0 %384
  %386 = vrot.lane.b32.xlu0 %v248, 1
  %v387 = vpop.permute.xlu0 %386
  %388 = vrot.lane.b32.xlu0 %v249, 1
  %v389 = vpop.permute.xlu0 %388
  %390 = vrot.lane.b32.xlu0 %v250, 1
  %v391 = vpop.permute.xlu0 %390
  %vm392 = vcmp.lt.s32.totalorder %v260, 1
  %v393 = vsel %vm392, %v389, %v391
  %v394 = vsel %vm392, %v387, %v389
  %v395 = vsel %vm392, %v385, %v387
  %v396 = vsel %vm392, %v391, %v385
  %s397 = scalar_lea.vmem %s2, 3
  %v398 = vld [vmem:[%s397] ss:$8 sm:$0xf]
  %v400 = vlaneseq
  %v401 = vshrl.u32 %v400, 7
  %v402 = vsub.s32 0, %v401
  %v403 = vrot.slane %v398, %v402
  %v404 = vlaneseq
  %v405 = vshrl.u32 %v404, 7
  %v406 = vsub.s32 1, %v405
  %v407 = vrot.slane %v398, %v406
  %v408 = vlaneseq
  %v409 = vshrl.u32 %v408, 7
  %v410 = vsub.s32 2, %v409
  %v411 = vrot.slane %v398, %v410
  %v412 = vlaneseq
  %v413 = vshrl.u32 %v412, 7
  %v414 = vsub.s32 3, %v413
  %v415 = vrot.slane %v398, %v414
  %v420 = vmul.f32 %v396, %v403
  %v421 = vmul.f32 %v395, %v407
  %v422 = vmul.f32 %v394, %v411
  %v423 = vmul.f32 %v393, %v415
  %424 = vst [vmem:[#allocation2 + $0x60] sm:$0xff] %v420
  %425 = vst [vmem:[#allocation2 + $0x68] sm:$0xff] %v421
  %426 = vst [vmem:[#allocation2 + $0x70] sm:$0xff] %v422
  %427 = vst [vmem:[#allocation2 + $0x78] sm:$0xff] %v423
  %s428 = scalar_lea.vmem %s2, 4
  %v429 = vld [vmem:[%s428] ss:$8 sm:$0xf]
  %v431 = vlaneseq
  %v432 = vshrl.u32 %v431, 7
  %v433 = vsub.s32 0, %v432
  %v434 = vrot.slane %v429, %v433
  %v435 = vlaneseq
  %v436 = vshrl.u32 %v435, 7
  %v437 = vsub.s32 1, %v436
  %v438 = vrot.slane %v429, %v437
  %v439 = vlaneseq
  %v440 = vshrl.u32 %v439, 7
  %v441 = vsub.s32 2, %v440
  %v442 = vrot.slane %v429, %v441
  %v443 = vlaneseq
  %v444 = vshrl.u32 %v443, 7
  %v445 = vsub.s32 3, %v444
  %v446 = vrot.slane %v429, %v445
  %v451 = vmul.f32 %v247, %v434
  %v452 = vmul.f32 %v248, %v438
  %v453 = vmul.f32 %v249, %v442
  %v454 = vmul.f32 %v250, %v446
  %455 = vst [vmem:[#allocation2 + $0x80] sm:$0xff] %v451
  %456 = vst [vmem:[#allocation2 + $0x88] sm:$0xff] %v452
  %457 = vst [vmem:[#allocation2 + $0x90] sm:$0xff] %v453
  %458 = vst [vmem:[#allocation2 + $0x98] sm:$0xff] %v454
  %459 = vrot.lane.b32.xlu0 %v247, 127
  %v460 = vpop.permute.xlu0 %459
  %461 = vrot.lane.b32.xlu0 %v248, 127
  %v462 = vpop.permute.xlu0 %461
  %463 = vrot.lane.b32.xlu0 %v249, 127
  %v464 = vpop.permute.xlu0 %463
  %465 = vrot.lane.b32.xlu0 %v250, 127
  %v466 = vpop.permute.xlu0 %465
  %vm467 = vcmp.lt.s32.totalorder %v260, 127
  %v468 = vsel %vm467, %v464, %v466
  %v469 = vsel %vm467, %v462, %v464
  %v470 = vsel %vm467, %v460, %v462
  %v471 = vsel %vm467, %v466, %v460
  %s472 = scalar_lea.vmem %s2, 5
  %v473 = vld [vmem:[%s472] ss:$8 sm:$0xf]
  %v475 = vlaneseq
  %v476 = vshrl.u32 %v475, 7
  %v477 = vsub.s32 0, %v476
  %v478 = vrot.slane %v473, %v477
  %v479 = vlaneseq
  %v480 = vshrl.u32 %v479, 7
  %v481 = vsub.s32 1, %v480
  %v482 = vrot.slane %v473, %v481
  %v483 = vlaneseq
  %v484 = vshrl.u32 %v483, 7
  %v485 = vsub.s32 2, %v484
  %v486 = vrot.slane %v473, %v485
  %v487 = vlaneseq
  %v488 = vshrl.u32 %v487, 7
  %v489 = vsub.s32 3, %v488
  %v490 = vrot.slane %v473, %v489
  %v495 = vmul.f32 %v470, %v478
  %v496 = vmul.f32 %v469, %v482
  %v497 = vmul.f32 %v468, %v486
  %v498 = vmul.f32 %v471, %v490
  %499 = vst [vmem:[#allocation2 + $0xa0] sm:$0xff] %v495
  %500 = vst [vmem:[#allocation2 + $0xa8] sm:$0xff] %v496
  %501 = vst [vmem:[#allocation2 + $0xb0] sm:$0xff] %v497
  %502 = vst [vmem:[#allocation2 + $0xb8] sm:$0xff] %v498
  %503 = vrot.lane.b32.xlu0 %v247, 113
  %v504 = vpop.permute.xlu0 %503
  %505 = vrot.lane.b32.xlu0 %v248, 113
  %v506 = vpop.permute.xlu0 %505
  %507 = vrot.lane.b32.xlu0 %v249, 113
  %v508 = vpop.permute.xlu0 %507
  %509 = vrot.lane.b32.xlu0 %v250, 113
  %v510 = vpop.permute.xlu0 %509
  %vm511 = vcmp.lt.s32.totalorder %v260, 113
  %v512 = vsel %vm511, %v508, %v510
  %v513 = vsel %vm511, %v506, %v508
  %v514 = vsel %vm511, %v504, %v506
  %v515 = vsel %vm511, %v510, %v504
  %s516 = scalar_lea.vmem %s2, 6
  %v517 = vld [vmem:[%s516] ss:$8 sm:$0xf]
  %v519 = vlaneseq
  %v520 = vshrl.u32 %v519, 7
  %v521 = vsub.s32 0, %v520
  %v522 = vrot.slane %v517, %v521
  %v523 = vlaneseq
  %v524 = vshrl.u32 %v523, 7
  %v525 = vsub.s32 1, %v524
  %v526 = vrot.slane %v517, %v525
  %v527 = vlaneseq
  %v528 = vshrl.u32 %v527, 7
  %v529 = vsub.s32 2, %v528
  %v530 = vrot.slane %v517, %v529
  %v531 = vlaneseq
  %v532 = vshrl.u32 %v531, 7
  %v533 = vsub.s32 3, %v532
  %v534 = vrot.slane %v517, %v533
  %v539 = vmul.f32 %v514, %v522
  %v540 = vmul.f32 %v513, %v526
  %v541 = vmul.f32 %v512, %v530
  %v542 = vmul.f32 %v515, %v534
  %543 = vst [vmem:[#allocation2 + $0xc0] sm:$0xff] %v539
  %544 = vst [vmem:[#allocation2 + $0xc8] sm:$0xff] %v540
  %545 = vst [vmem:[#allocation2 + $0xd0] sm:$0xff] %v541
  %546 = vst [vmem:[#allocation2 + $0xd8] sm:$0xff] %v542
  %547 = vrot.lane.b32.xlu0 %v247, 112
  %v548 = vpop.permute.xlu0 %547
  %549 = vrot.lane.b32.xlu0 %v248, 112
  %v550 = vpop.permute.xlu0 %549
  %551 = vrot.lane.b32.xlu0 %v249, 112
  %v552 = vpop.permute.xlu0 %551
  %553 = vrot.lane.b32.xlu0 %v250, 112
  %v554 = vpop.permute.xlu0 %553
  %vm555 = vcmp.lt.s32.totalorder %v260, 112
  %v556 = vsel %vm555, %v552, %v554
  %v557 = vsel %vm555, %v550, %v552
  %v558 = vsel %vm555, %v548, %v550
  %v559 = vsel %vm555, %v554, %v548
  %s560 = scalar_lea.vmem %s2, 7
  %v561 = vld [vmem:[%s560] ss:$8 sm:$0xf]
  %v563 = vlaneseq
  %v564 = vshrl.u32 %v563, 7
  %v565 = vsub.s32 0, %v564
  %v566 = vrot.slane %v561, %v565
  %v567 = vlaneseq
  %v568 = vshrl.u32 %v567, 7
  %v569 = vsub.s32 1, %v568
  %v570 = vrot.slane %v561, %v569
  %v571 = vlaneseq
  %v572 = vshrl.u32 %v571, 7
  %v573 = vsub.s32 2, %v572
  %v574 = vrot.slane %v561, %v573
  %v575 = vlaneseq
  %v576 = vshrl.u32 %v575, 7
  %v577 = vsub.s32 3, %v576
  %v578 = vrot.slane %v561, %v577
  %v583 = vmul.f32 %v558, %v566
  %v584 = vmul.f32 %v557, %v570
  %v585 = vmul.f32 %v556, %v574
  %v586 = vmul.f32 %v559, %v578
  %587 = vst [vmem:[#allocation2 + $0xe0] sm:$0xff] %v583
  %588 = vst [vmem:[#allocation2 + $0xe8] sm:$0xff] %v584
  %589 = vst [vmem:[#allocation2 + $0xf0] sm:$0xff] %v585
  %590 = vst [vmem:[#allocation2 + $0xf8] sm:$0xff] %v586
  %591 = vrot.lane.b32.xlu0 %v247, 111
  %v592 = vpop.permute.xlu0 %591
  %593 = vrot.lane.b32.xlu0 %v248, 111
  %v594 = vpop.permute.xlu0 %593
  %595 = vrot.lane.b32.xlu0 %v249, 111
  %v596 = vpop.permute.xlu0 %595
  %597 = vrot.lane.b32.xlu0 %v250, 111
  %v598 = vpop.permute.xlu0 %597
  %vm599 = vcmp.lt.s32.totalorder %v260, 111
  %v600 = vsel %vm599, %v596, %v598
  %v601 = vsel %vm599, %v594, %v596
  %v602 = vsel %vm599, %v592, %v594
  %v603 = vsel %vm599, %v598, %v592
  %s604 = scalar_lea.vmem %s2, 32
  %v605 = vld [vmem:[%s604] ss:$8 sm:$0xf]
  %v607 = vlaneseq
  %v608 = vshrl.u32 %v607, 7
  %v609 = vsub.s32 0, %v608
  %v610 = vrot.slane %v605, %v609
  %v611 = vlaneseq
  %v612 = vshrl.u32 %v611, 7
  %v613 = vsub.s32 1, %v612
  %v614 = vrot.slane %v605, %v613
  %v615 = vlaneseq
  %v616 = vshrl.u32 %v615, 7
  %v617 = vsub.s32 2, %v616
  %v618 = vrot.slane %v605, %v617
  %v619 = vlaneseq
  %v620 = vshrl.u32 %v619, 7
  %v621 = vsub.s32 3, %v620
  %v622 = vrot.slane %v605, %v621
  %v627 = vmul.f32 %v602, %v610
  %v628 = vmul.f32 %v601, %v614
  %v629 = vmul.f32 %v600, %v618
  %v630 = vmul.f32 %v603, %v622
  %631 = vst [vmem:[#allocation2 + $0x100] sm:$0xff] %v627
  %632 = vst [vmem:[#allocation2 + $0x108] sm:$0xff] %v628
  %633 = vst [vmem:[#allocation2 + $0x110] sm:$0xff] %v629
  %634 = vst [vmem:[#allocation2 + $0x118] sm:$0xff] %v630
  %v635 = vld [vmem:[%s6] sm:$0xff]
  %v636 = vld [vmem:[#allocation2] sm:$0xff]
  %v637 = vld [vmem:[#allocation2 + $0x8] sm:$0xff]
  %v638 = vld [vmem:[#allocation2 + $0x10] sm:$0xff]
  %v639 = vld [vmem:[#allocation2 + $0x18] sm:$0xff]
  %v640 = vld [vmem:[#allocation2 + $0x20] sm:$0xff]
  %v641 = vld [vmem:[#allocation2 + $0x28] sm:$0xff]
  %v642 = vld [vmem:[#allocation2 + $0x30] sm:$0xff]
  %v643 = vld [vmem:[#allocation2 + $0x38] sm:$0xff]
  %v644 = vld [vmem:[#allocation2 + $0x40] sm:$0xff]
  %v645 = vld [vmem:[#allocation2 + $0x48] sm:$0xff]
  %v646 = vld [vmem:[#allocation2 + $0x50] sm:$0xff]
  %v647 = vld [vmem:[#allocation2 + $0x58] sm:$0xff]
  %v648 = vld [vmem:[#allocation2 + $0x60] sm:$0xff]
  %v649 = vld [vmem:[#allocation2 + $0x68] sm:$0xff]
  %v650 = vld [vmem:[#allocation2 + $0x70] sm:$0xff]
  %v651 = vld [vmem:[#allocation2 + $0x78] sm:$0xff]
  %v652 = vld [vmem:[#allocation2 + $0x80] sm:$0xff]
  %v653 = vld [vmem:[#allocation2 + $0x88] sm:$0xff]
  %v654 = vld [vmem:[#allocation2 + $0x90] sm:$0xff]
  %v655 = vld [vmem:[#allocation2 + $0x98] sm:$0xff]
  %v656 = vld [vmem:[#allocation2 + $0xa0] sm:$0xff]
  %v657 = vld [vmem:[#allocation2 + $0xa8] sm:$0xff]
  %v658 = vld [vmem:[#allocation2 + $0xb0] sm:$0xff]
  %v659 = vld [vmem:[#allocation2 + $0xb8] sm:$0xff]
  %v660 = vld [vmem:[#allocation2 + $0xc0] sm:$0xff]
  %v661 = vld [vmem:[#allocation2 + $0xc8] sm:$0xff]
  %v662 = vld [vmem:[#allocation2 + $0xd0] sm:$0xff]
  %v663 = vld [vmem:[#allocation2 + $0xd8] sm:$0xff]
  %v664 = vld [vmem:[#allocation2 + $0xe0] sm:$0xff]
  %v665 = vld [vmem:[#allocation2 + $0xe8] sm:$0xff]
  %v666 = vld [vmem:[#allocation2 + $0xf0] sm:$0xff]
  %v667 = vld [vmem:[#allocation2 + $0xf8] sm:$0xff]
  %v668 = vld [vmem:[#allocation2 + $0x100] sm:$0xff]
  %v669 = vld [vmem:[#allocation2 + $0x108] sm:$0xff]
  %v670 = vld [vmem:[#allocation2 + $0x110] sm:$0xff]
  %v671 = vld [vmem:[#allocation2 + $0x118] sm:$0xff]
  %vm672 = vcmask 588800
  %v674 = vsel %vm672, %v635, 0
  %676 = vmatprep.subr.mxu0 0.0
  %677 = vmatpush1.msra.mxu0 0.0
  %678 = vmatprep.subr.mxu0 0.0
  %679 = vmatpush1.msra.mxu0 0.0
  %680 = vmatprep.subr.mxu0 0.0
  %681 = vmatpush1.msra.mxu0 0.0
  %682 = vmatprep.subr.mxu0 0.0
  %683 = vmatpush1.msra.mxu0 0.0
  %684 = vmatprep.subr.mxu0 0.0
  %685 = vmatpush1.msra.mxu0 0.0
  %686 = vmatprep.subr.mxu0 0.0
  %687 = vmatpush1.msra.mxu0 0.0
  %688 = vmatprep.subr.mxu0 0.0
  %689 = vmatpush1.msra.mxu0 0.0
  %690 = vmatprep.subr.mxu0 %v669
  %691 = vmatpush1.msra.mxu0 %v668
  %692 = vmatprep.subr.mxu0 %v665
  %693 = vmatpush1.msra.mxu0 %v664
  %694 = vmatprep.subr.mxu0 %v661
  %695 = vmatpush1.msra.mxu0 %v660
  %696 = vmatprep.subr.mxu0 %v657
  %697 = vmatpush1.msra.mxu0 %v656
  %698 = vmatprep.subr.mxu0 %v653
  %699 = vmatpush1.msra.mxu0 %v652
  %700 = vmatprep.subr.mxu0 %v649
  %701 = vmatpush1.msra.mxu0 %v648
  %702 = vmatprep.subr.mxu0 %v645
  %703 = vmatpush1.msra.mxu0 %v644
  %704 = vmatprep.subr.mxu0 %v641
  %705 = vmatpush1.msra.mxu0 %v640
  %706 = vmatprep.subr.mxu0 %v637
  %707 = vmatpush1.msra.mxu0 %v636
  %708 = vmatprep.subr.mxu0 0.0
  %709 = vmatpush2.msra.mxu0 0.0
  %710 = vmatprep.subr.mxu0 0.0
  %711 = vmatpush2.msra.mxu0 0.0
  %712 = vmatprep.subr.mxu0 0.0
  %713 = vmatpush2.msra.mxu0 0.0
  %714 = vmatprep.subr.mxu0 0.0
  %715 = vmatpush2.msra.mxu0 0.0
  %716 = vmatprep.subr.mxu0 0.0
  %717 = vmatpush2.msra.mxu0 0.0
  %718 = vmatprep.subr.mxu0 0.0
  %719 = vmatpush2.msra.mxu0 0.0
  %720 = vmatprep.subr.mxu0 0.0
  %721 = vmatpush2.msra.mxu0 0.0
  %722 = vmatprep.subr.mxu0 0.0
  %723 = vmatpush2.msra.mxu0 0.0
  %724 = vmatprep.subr.mxu0 0.0
  %725 = vmatpush2.msra.mxu0 0.0
  %726 = vmatprep.subr.mxu0 0.0
  %727 = vmatpush2.msra.mxu0 0.0
  %728 = vmatprep.subr.mxu0 0.0
  %729 = vmatpush2.msra.mxu0 0.0
  %730 = vmatprep.subr.mxu0 0.0
  %731 = vmatpush2.msra.mxu0 0.0
  %732 = vmatprep.subr.mxu0 0.0
  %733 = vmatpush2.msra.mxu0 0.0
  %734 = vmatprep.subr.mxu0 0.0
  %735 = vmatpush2.msra.mxu0 0.0
  %736 = vmatprep.subr.mxu0 0.0
  %737 = vmatpush2.msra.mxu0 0.0
  %738 = vmatprep.subr.mxu0 0.0
  %739 = vmatpush2.msra.mxu0 0.0
  %740 = vmatprep.mubr.f32.mxu0 0.0
  %741 = vmatmul.mubr.f32.gmra.mxu0 %v674
  %v742 = vpop.f32.mrf.mxu0
  %v743 = vadd.f32 0.0, %v742
  %v744 = vpop.f32.mrf.mxu0
  %v745 = vadd.f32 0.0, %v744
  %746 = vdwg.mxu0
  %747 = vmatprep.subr.mxu0 0.0
  %748 = vmatpush1.msra.mxu0 0.0
  %749 = vmatprep.subr.mxu0 0.0
  %750 = vmatpush1.msra.mxu0 0.0
  %751 = vmatprep.subr.mxu0 0.0
  %752 = vmatpush1.msra.mxu0 0.0
  %753 = vmatprep.subr.mxu0 0.0
  %754 = vmatpush1.msra.mxu0 0.0
  %755 = vmatprep.subr.mxu0 0.0
  %756 = vmatpush1.msra.mxu0 0.0
  %757 = vmatprep.subr.mxu0 0.0
  %758 = vmatpush1.msra.mxu0 0.0
  %759 = vmatprep.subr.mxu0 0.0
  %760 = vmatpush1.msra.mxu0 0.0
  %761 = vmatprep.subr.mxu0 %v671
  %762 = vmatpush1.msra.mxu0 %v670
  %763 = vmatprep.subr.mxu0 %v667
  %764 = vmatpush1.msra.mxu0 %v666
  %765 = vmatprep.subr.mxu0 %v663
  %766 = vmatpush1.msra.mxu0 %v662
  %767 = vmatprep.subr.mxu0 %v659
  %768 = vmatpush1.msra.mxu0 %v658
  %769 = vmatprep.subr.mxu0 %v655
  %770 = vmatpush1.msra.mxu0 %v654
  %771 = vmatprep.subr.mxu0 %v651
  %772 = vmatpush1.msra.mxu0 %v650
  %773 = vmatprep.subr.mxu0 %v647
  %774 = vmatpush1.msra.mxu0 %v646
  %775 = vmatprep.subr.mxu0 %v643
  %776 = vmatpush1.msra.mxu0 %v642
  %777 = vmatprep.subr.mxu0 %v639
  %778 = vmatpush1.msra.mxu0 %v638
  %779 = vmatprep.subr.mxu0 0.0
  %780 = vmatpush2.msra.mxu0 0.0
  %781 = vmatprep.subr.mxu0 0.0
  %782 = vmatpush2.msra.mxu0 0.0
  %783 = vmatprep.subr.mxu0 0.0
  %784 = vmatpush2.msra.mxu0 0.0
  %785 = vmatprep.subr.mxu0 0.0
  %786 = vmatpush2.msra.mxu0 0.0
  %787 = vmatprep.subr.mxu0 0.0
  %788 = vmatpush2.msra.mxu0 0.0
  %789 = vmatprep.subr.mxu0 0.0
  %790 = vmatpush2.msra.mxu0 0.0
  %791 = vmatprep.subr.mxu0 0.0
  %792 = vmatpush2.msra.mxu0 0.0
  %793 = vmatprep.subr.mxu0 0.0
  %794 = vmatpush2.msra.mxu0 0.0
  %795 = vmatprep.subr.mxu0 0.0
  %796 = vmatpush2.msra.mxu0 0.0
  %797 = vmatprep.subr.mxu0 0.0
  %798 = vmatpush2.msra.mxu0 0.0
  %799 = vmatprep.subr.mxu0 0.0
  %800 = vmatpush2.msra.mxu0 0.0
  %801 = vmatprep.subr.mxu0 0.0
  %802 = vmatpush2.msra.mxu0 0.0
  %803 = vmatprep.subr.mxu0 0.0
  %804 = vmatpush2.msra.mxu0 0.0
  %805 = vmatprep.subr.mxu0 0.0
  %806 = vmatpush2.msra.mxu0 0.0
  %807 = vmatprep.subr.mxu0 0.0
  %808 = vmatpush2.msra.mxu0 0.0
  %809 = vmatprep.subr.mxu0 0.0
  %810 = vmatpush2.msra.mxu0 0.0
  %811 = vmatprep.mubr.f32.mxu0 0.0
  %812 = vmatmul.mubr.f32.gmra.mxu0 %v674
  %v813 = vpop.f32.mrf.mxu0
  %v814 = vadd.f32 0.0, %v813
  %v815 = vpop.f32.mrf.mxu0
  %v816 = vadd.f32 0.0, %v815
  %817 = vdwg.mxu0
  %v818 = vadd.f32 %v743, %v745
  %v819 = vadd.f32 %v818, %v814
  %v820 = vadd.f32 %v819, %v816
  %821 = vadd.xlane.f32.xlu0 %v820
  %v822 = vpop.xlane.xlu0 %821
  %v823 = vmul.f32 %v822, 0.001953125
  %v824 = vsub.f32 %v743, %v823
  %v825 = vsub.f32 %v745, %v823
  %v826 = vsub.f32 %v814, %v823
  %v827 = vsub.f32 %v816, %v823
  %v828 = vmul.f32 %v824, %v824
  %v829 = vmul.f32 %v825, %v825
  %v830 = vmul.f32 %v826, %v826
  %v831 = vmul.f32 %v827, %v827
  %v832 = vadd.f32 %v828, %v829
  %v833 = vadd.f32 %v832, %v830
  %v834 = vadd.f32 %v833, %v831
  %835 = vadd.xlane.f32.xlu0 %v834
  %v836 = vpop.xlane.xlu0 %835
  %v837 = vmul.f32 %v836, 0.001953125
  %v838 = vld [vmem:[%s7] sm:$0xff]
  %840 = vset.pattern.permute.xlu0 0
  %841 = vperm.xlu0 %840, %v838
  %v842 = vpop.permute.xlu0 %841
  %v844 = vmul.f32 %v842, %v824
  %v845 = vmul.f32 %v842, %v825
  %v846 = vmul.f32 %v842, %v826
  %v847 = vmul.f32 %v842, %v827
  %v848 = vadd.f32 %v837, 1e-05
  %v849 = vrsqrt.pop %v848
  %v850 = vmul.f32 %v844, %v849
  %v851 = vmul.f32 %v845, %v849
  %v852 = vmul.f32 %v846, %v849
  %v853 = vmul.f32 %v847, %v849
  %v854 = vld [vmem:[%s8] sm:$0xff]
  %856 = vset.pattern.permute.xlu0 0
  %857 = vperm.xlu0 %856, %v854
  %v858 = vpop.permute.xlu0 %857
  %v860 = vadd.f32 %v850, %v858
  %v861 = vadd.f32 %v851, %v858
  %v862 = vadd.f32 %v852, %v858
  %v863 = vadd.f32 %v853, %v858
  %v864 = vmax.f32 %v860, 0.0
  %v865 = vmax.f32 %v861, 0.0
  %v866 = vmax.f32 %v862, 0.0
  %v867 = vmax.f32 %v863, 0.0
  %v868 = vld [vmem:[%s9] sm:$0xff]
  %v869 = vld [vmem:[%s10] sm:$0xff]
  %v871 = vsel %vm55, %v869, 0
  %873 = vmatprep.subr.mxu0 0.0
  %874 = vmatpush1.msra.mxu0 0.0
  %875 = vmatprep.subr.mxu0 0.0
  %876 = vmatpush1.msra.mxu0 0.0
  %877 = vmatprep.subr.mxu0 0.0
  %878 = vmatpush1.msra.mxu0 0.0
  %879 = vmatprep.subr.mxu0 0.0
  %880 = vmatpush1.msra.mxu0 0.0
  %881 = vmatprep.subr.mxu0 0.0
  %882 = vmatpush1.msra.mxu0 0.0
  %883 = vmatprep.subr.mxu0 0.0
  %884 = vmatpush1.msra.mxu0 0.0
  %885 = vmatprep.subr.mxu0 0.0
  %886 = vmatpush1.msra.mxu0 0.0
  %887 = vmatprep.subr.mxu0 0.0
  %888 = vmatpush1.msra.mxu0 0.0
  %889 = vmatprep.subr.mxu0 0.0
  %890 = vmatpush1.msra.mxu0 0.0
  %891 = vmatprep.subr.mxu0 0.0
  %892 = vmatpush1.msra.mxu0 0.0
  %893 = vmatprep.subr.mxu0 0.0
  %894 = vmatpush1.msra.mxu0 0.0
  %895 = vmatprep.subr.mxu0 0.0
  %896 = vmatpush1.msra.mxu0 0.0
  %897 = vmatprep.subr.mxu0 0.0
  %898 = vmatpush1.msra.mxu0 0.0
  %899 = vmatprep.subr.mxu0 0.0
  %900 = vmatpush1.msra.mxu0 0.0
  %901 = vmatprep.subr.mxu0 0.0
  %902 = vmatpush1.msra.mxu0 0.0
  %903 = vmatprep.subr.mxu0 %v865
  %904 = vmatpush1.msra.mxu0 %v864
  %905 = vmatprep.subr.mxu0 0.0
  %906 = vmatpush2.msra.mxu0 0.0
  %907 = vmatprep.subr.mxu0 0.0
  %908 = vmatpush2.msra.mxu0 0.0
  %909 = vmatprep.subr.mxu0 0.0
  %910 = vmatpush2.msra.mxu0 0.0
  %911 = vmatprep.subr.mxu0 0.0
  %912 = vmatpush2.msra.mxu0 0.0
  %913 = vmatprep.subr.mxu0 0.0
  %914 = vmatpush2.msra.mxu0 0.0
  %915 = vmatprep.subr.mxu0 0.0
  %916 = vmatpush2.msra.mxu0 0.0
  %917 = vmatprep.subr.mxu0 0.0
  %918 = vmatpush2.msra.mxu0 0.0
  %919 = vmatprep.subr.mxu0 0.0
  %920 = vmatpush2.msra.mxu0 0.0
  %921 = vmatprep.subr.mxu0 0.0
  %922 = vmatpush2.msra.mxu0 0.0
  %923 = vmatprep.subr.mxu0 0.0
  %924 = vmatpush2.msra.mxu0 0.0
  %925 = vmatprep.subr.mxu0 0.0
  %926 = vmatpush2.msra.mxu0 0.0
  %927 = vmatprep.subr.mxu0 0.0
  %928 = vmatpush2.msra.mxu0 0.0
  %929 = vmatprep.subr.mxu0 0.0
  %930 = vmatpush2.msra.mxu0 0.0
  %931 = vmatprep.subr.mxu0 0.0
  %932 = vmatpush2.msra.mxu0 0.0
  %933 = vmatprep.subr.mxu0 0.0
  %934 = vmatpush2.msra.mxu0 0.0
  %935 = vmatprep.subr.mxu0 0.0
  %936 = vmatpush2.msra.mxu0 0.0
  %937 = vmatprep.mubr.f32.mxu0 0.0
  %938 = vmatmul.mubr.f32.gmra.mxu0 %v871
  %v939 = vpop.f32.mrf.mxu0
  %v940 = vadd.f32 0.0, %v939
  %v941 = vpop.f32.mrf.mxu0
  %v942 = vadd.f32 0.0, %v941
  %943 = vdwg.mxu0
  %944 = vmatprep.subr.mxu0 0.0
  %945 = vmatpush1.msra.mxu0 0.0
  %946 = vmatprep.subr.mxu0 0.0
  %947 = vmatpush1.msra.mxu0 0.0
  %948 = vmatprep.subr.mxu0 0.0
  %949 = vmatpush1.msra.mxu0 0.0
  %950 = vmatprep.subr.mxu0 0.0
  %951 = vmatpush1.msra.mxu0 0.0
  %952 = vmatprep.subr.mxu0 0.0
  %953 = vmatpush1.msra.mxu0 0.0
  %954 = vmatprep.subr.mxu0 0.0
  %955 = vmatpush1.msra.mxu0 0.0
  %956 = vmatprep.subr.mxu0 0.0
  %957 = vmatpush1.msra.mxu0 0.0
  %958 = vmatprep.subr.mxu0 0.0
  %959 = vmatpush1.msra.mxu0 0.0
  %960 = vmatprep.subr.mxu0 0.0
  %961 = vmatpush1.msra.mxu0 0.0
  %962 = vmatprep.subr.mxu0 0.0
  %963 = vmatpush1.msra.mxu0 0.0
  %964 = vmatprep.subr.mxu0 0.0
  %965 = vmatpush1.msra.mxu0 0.0
  %966 = vmatprep.subr.mxu0 0.0
  %967 = vmatpush1.msra.mxu0 0.0
  %968 = vmatprep.subr.mxu0 0.0
  %969 = vmatpush1.msra.mxu0 0.0
  %970 = vmatprep.subr.mxu0 0.0
  %971 = vmatpush1.msra.mxu0 0.0
  %972 = vmatprep.subr.mxu0 0.0
  %973 = vmatpush1.msra.mxu0 0.0
  %974 = vmatprep.subr.mxu0 %v867
  %975 = vmatpush1.msra.mxu0 %v866
  %976 = vmatprep.subr.mxu0 0.0
  %977 = vmatpush2.msra.mxu0 0.0
  %978 = vmatprep.subr.mxu0 0.0
  %979 = vmatpush2.msra.mxu0 0.0
  %980 = vmatprep.subr.mxu0 0.0
  %981 = vmatpush2.msra.mxu0 0.0
  %982 = vmatprep.subr.mxu0 0.0
  %983 = vmatpush2.msra.mxu0 0.0
  %984 = vmatprep.subr.mxu0 0.0
  %985 = vmatpush2.msra.mxu0 0.0
  %986 = vmatprep.subr.mxu0 0.0
  %987 = vmatpush2.msra.mxu0 0.0
  %988 = vmatprep.subr.mxu0 0.0
  %989 = vmatpush2.msra.mxu0 0.0
  %990 = vmatprep.subr.mxu0 0.0
  %991 = vmatpush2.msra.mxu0 0.0
  %992 = vmatprep.subr.mxu0 0.0
  %993 = vmatpush2.msra.mxu0 0.0
  %994 = vmatprep.subr.mxu0 0.0
  %995 = vmatpush2.msra.mxu0 0.0
  %996 = vmatprep.subr.mxu0 0.0
  %997 = vmatpush2.msra.mxu0 0.0
  %998 = vmatprep.subr.mxu0 0.0
  %999 = vmatpush2.msra.mxu0 0.0
  %1000 = vmatprep.subr.mxu0 0.0
  %1001 = vmatpush2.msra.mxu0 0.0
  %1002 = vmatprep.subr.mxu0 0.0
  %1003 = vmatpush2.msra.mxu0 0.0
  %1004 = vmatprep.subr.mxu0 0.0
  %1005 = vmatpush2.msra.mxu0 0.0
  %1006 = vmatprep.subr.mxu0 0.0
  %1007 = vmatpush2.msra.mxu0 0.0
  %1008 = vmatprep.mubr.f32.mxu0 0.0
  %1009 = vmatmul.mubr.f32.gmra.mxu0 %v871
  %v1010 = vpop.f32.mrf.mxu0
  %v1011 = vadd.f32 0.0, %v1010
  %v1012 = vpop.f32.mrf.mxu0
  %v1013 = vadd.f32 0.0, %v1012
  %1014 = vdwg.mxu0
  %v1016 = vsel %vm55, %v868, 0
  %1018 = vmatprep.subr.mxu0 0.0
  %1019 = vmatpush1.msra.mxu0 0.0
  %1020 = vmatprep.subr.mxu0 0.0
  %1021 = vmatpush1.msra.mxu0 0.0
  %1022 = vmatprep.subr.mxu0 0.0
  %1023 = vmatpush1.msra.mxu0 0.0
  %1024 = vmatprep.subr.mxu0 0.0
  %1025 = vmatpush1.msra.mxu0 0.0
  %1026 = vmatprep.subr.mxu0 0.0
  %1027 = vmatpush1.msra.mxu0 0.0
  %1028 = vmatprep.subr.mxu0 0.0
  %1029 = vmatpush1.msra.mxu0 0.0
  %1030 = vmatprep.subr.mxu0 0.0
  %1031 = vmatpush1.msra.mxu0 0.0
  %1032 = vmatprep.subr.mxu0 0.0
  %1033 = vmatpush1.msra.mxu0 0.0
  %1034 = vmatprep.subr.mxu0 0.0
  %1035 = vmatpush1.msra.mxu0 0.0
  %1036 = vmatprep.subr.mxu0 0.0
  %1037 = vmatpush1.msra.mxu0 0.0
  %1038 = vmatprep.subr.mxu0 0.0
  %1039 = vmatpush1.msra.mxu0 0.0
  %1040 = vmatprep.subr.mxu0 0.0
  %1041 = vmatpush1.msra.mxu0 0.0
  %1042 = vmatprep.subr.mxu0 0.0
  %1043 = vmatpush1.msra.mxu0 0.0
  %1044 = vmatprep.subr.mxu0 0.0
  %1045 = vmatpush1.msra.mxu0 0.0
  %1046 = vmatprep.subr.mxu0 0.0
  %1047 = vmatpush1.msra.mxu0 0.0
  %1048 = vmatprep.subr.mxu0 %v50
  %1049 = vmatpush1.msra.mxu0 %v49
  %1050 = vmatprep.subr.mxu0 0.0
  %1051 = vmatpush2.msra.mxu0 0.0
  %1052 = vmatprep.subr.mxu0 0.0
  %1053 = vmatpush2.msra.mxu0 0.0
  %1054 = vmatprep.subr.mxu0 0.0
  %1055 = vmatpush2.msra.mxu0 0.0
  %1056 = vmatprep.subr.mxu0 0.0
  %1057 = vmatpush2.msra.mxu0 0.0
  %1058 = vmatprep.subr.mxu0 0.0
  %1059 = vmatpush2.msra.mxu0 0.0
  %1060 = vmatprep.subr.mxu0 0.0
  %1061 = vmatpush2.msra.mxu0 0.0
  %1062 = vmatprep.subr.mxu0 0.0
  %1063 = vmatpush2.msra.mxu0 0.0
  %1064 = vmatprep.subr.mxu0 0.0
  %1065 = vmatpush2.msra.mxu0 0.0
  %1066 = vmatprep.subr.mxu0 0.0
  %1067 = vmatpush2.msra.mxu0 0.0
  %1068 = vmatprep.subr.mxu0 0.0
  %1069 = vmatpush2.msra.mxu0 0.0
  %1070 = vmatprep.subr.mxu0 0.0
  %1071 = vmatpush2.msra.mxu0 0.0
  %1072 = vmatprep.subr.mxu0 0.0
  %1073 = vmatpush2.msra.mxu0 0.0
  %1074 = vmatprep.subr.mxu0 0.0
  %1075 = vmatpush2.msra.mxu0 0.0
  %1076 = vmatprep.subr.mxu0 0.0
  %1077 = vmatpush2.msra.mxu0 0.0
  %1078 = vmatprep.subr.mxu0 0.0
  %1079 = vmatpush2.msra.mxu0 0.0
  %1080 = vmatprep.subr.mxu0 0.0
  %1081 = vmatpush2.msra.mxu0 0.0
  %1082 = vmatprep.mubr.f32.mxu0 0.0
  %1083 = vmatmul.mubr.f32.gmra.mxu0 %v1016
  %v1084 = vpop.f32.mrf.mxu0
  %v1085 = vadd.f32 %v940, %v1084
  %v1086 = vpop.f32.mrf.mxu0
  %v1087 = vadd.f32 %v942, %v1086
  %1088 = vdwg.mxu0
  %1089 = vmatprep.subr.mxu0 0.0
  %1090 = vmatpush1.msra.mxu0 0.0
  %1091 = vmatprep.subr.mxu0 0.0
  %1092 = vmatpush1.msra.mxu0 0.0
  %1093 = vmatprep.subr.mxu0 0.0
  %1094 = vmatpush1.msra.mxu0 0.0
  %1095 = vmatprep.subr.mxu0 0.0
  %1096 = vmatpush1.msra.mxu0 0.0
  %1097 = vmatprep.subr.mxu0 0.0
  %1098 = vmatpush1.msra.mxu0 0.0
  %1099 = vmatprep.subr.mxu0 0.0
  %1100 = vmatpush1.msra.mxu0 0.0
  %1101 = vmatprep.subr.mxu0 0.0
  %1102 = vmatpush1.msra.mxu0 0.0
  %1103 = vmatprep.subr.mxu0 0.0
  %1104 = vmatpush1.msra.mxu0 0.0
  %1105 = vmatprep.subr.mxu0 0.0
  %1106 = vmatpush1.msra.mxu0 0.0
  %1107 = vmatprep.subr.mxu0 0.0
  %1108 = vmatpush1.msra.mxu0 0.0
  %1109 = vmatprep.subr.mxu0 0.0
  %1110 = vmatpush1.msra.mxu0 0.0
  %1111 = vmatprep.subr.mxu0 0.0
  %1112 = vmatpush1.msra.mxu0 0.0
  %1113 = vmatprep.subr.mxu0 0.0
  %1114 = vmatpush1.msra.mxu0 0.0
  %1115 = vmatprep.subr.mxu0 0.0
  %1116 = vmatpush1.msra.mxu0 0.0
  %1117 = vmatprep.subr.mxu0 0.0
  %1118 = vmatpush1.msra.mxu0 0.0
  %1119 = vmatprep.subr.mxu0 %v53
  %1120 = vmatpush1.msra.mxu0 %v52
  %1121 = vmatprep.subr.mxu0 0.0
  %1122 = vmatpush2.msra.mxu0 0.0
  %1123 = vmatprep.subr.mxu0 0.0
  %1124 = vmatpush2.msra.mxu0 0.0
  %1125 = vmatprep.subr.mxu0 0.0
  %1126 = vmatpush2.msra.mxu0 0.0
  %1127 = vmatprep.subr.mxu0 0.0
  %1128 = vmatpush2.msra.mxu0 0.0
  %1129 = vmatprep.subr.mxu0 0.0
  %1130 = vmatpush2.msra.mxu0 0.0
  %1131 = vmatprep.subr.mxu0 0.0
  %1132 = vmatpush2.msra.mxu0 0.0
  %1133 = vmatprep.subr.mxu0 0.0
  %1134 = vmatpush2.msra.mxu0 0.0
  %1135 = vmatprep.subr.mxu0 0.0
  %1136 = vmatpush2.msra.mxu0 0.0
  %1137 = vmatprep.subr.mxu0 0.0
  %1138 = vmatpush2.msra.mxu0 0.0
  %1139 = vmatprep.subr.mxu0 0.0
  %1140 = vmatpush2.msra.mxu0 0.0
  %1141 = vmatprep.subr.mxu0 0.0
  %1142 = vmatpush2.msra.mxu0 0.0
  %1143 = vmatprep.subr.mxu0 0.0
  %1144 = vmatpush2.msra.mxu0 0.0
  %1145 = vmatprep.subr.mxu0 0.0
  %1146 = vmatpush2.msra.mxu0 0.0
  %1147 = vmatprep.subr.mxu0 0.0
  %1148 = vmatpush2.msra.mxu0 0.0
  %1149 = vmatprep.subr.mxu0 0.0
  %1150 = vmatpush2.msra.mxu0 0.0
  %1151 = vmatprep.subr.mxu0 0.0
  %1152 = vmatpush2.msra.mxu0 0.0
  %1153 = vmatprep.mubr.f32.mxu0 0.0
  %1154 = vmatmul.mubr.f32.gmra.mxu0 %v1016
  %v1155 = vpop.f32.mrf.mxu0
  %v1156 = vadd.f32 %v1011, %v1155
  %v1157 = vpop.f32.mrf.mxu0
  %v1158 = vadd.f32 %v1013, %v1157
  %1159 = vdwg.mxu0
  %v1160 = vmax.f32 %v1085, 0.0
  %v1161 = vmax.f32 %v1087, 0.0
  %v1162 = vmax.f32 %v1156, 0.0
  %v1163 = vmax.f32 %v1158, 0.0
  %v1164 = vadd.f32 %v1160, %v1161
  %v1165 = vadd.f32 %v1164, %v1162
  %v1166 = vadd.f32 %v1165, %v1163
  %1167 = vadd.xlane.f32.xlu0 %v1166
  %v1168 = vpop.xlane.xlu0 %1167
  %v1169 = vmul.f32 %v1168, 0.001953125
  %v1170 = vsub.f32 %v1160, %v1169
  %v1171 = vsub.f32 %v1161, %v1169
  %v1172 = vsub.f32 %v1162, %v1169
  %v1173 = vsub.f32 %v1163, %v1169
  %v1174 = vmul.f32 %v1170, %v1170
  %v1175 = vmul.f32 %v1171, %v1171
  %v1176 = vmul.f32 %v1172, %v1172
  %v1177 = vmul.f32 %v1173, %v1173
  %v1178 = vadd.f32 %v1174, %v1175
  %v1179 = vadd.f32 %v1178, %v1176
  %v1180 = vadd.f32 %v1179, %v1177
  %1181 = vadd.xlane.f32.xlu0 %v1180
  %v1182 = vpop.xlane.xlu0 %1181
  %v1183 = vmul.f32 %v1182, 0.001953125
  %v1184 = vld [vmem:[%s11] sm:$0xff]
  %1186 = vset.pattern.permute.xlu0 0
  %1187 = vperm.xlu0 %1186, %v1184
  %v1188 = vpop.permute.xlu0 %1187
  %v1190 = vmul.f32 %v1188, %v1170
  %v1191 = vmul.f32 %v1188, %v1171
  %v1192 = vmul.f32 %v1188, %v1172
  %v1193 = vmul.f32 %v1188, %v1173
  %v1194 = vadd.f32 %v1183, 1e-05
  %v1195 = vrsqrt.pop %v1194
  %v1196 = vmul.f32 %v1190, %v1195
  %v1197 = vmul.f32 %v1191, %v1195
  %v1198 = vmul.f32 %v1192, %v1195
  %v1199 = vmul.f32 %v1193, %v1195
  %v1200 = vld [vmem:[%s12] sm:$0xff]
  %1202 = vset.pattern.permute.xlu0 0
  %1203 = vperm.xlu0 %1202, %v1200
  %v1204 = vpop.permute.xlu0 %1203
  %v1206 = vadd.f32 %v1196, %v1204
  %v1207 = vadd.f32 %v1197, %v1204
  %v1208 = vadd.f32 %v1198, %v1204
  %v1209 = vadd.f32 %v1199, %v1204
  %1210 = vst [vmem:[%s13] sm:$0xff] %v1206
  %1211 = vst [vmem:[%s13 + $0x8] sm:$0xff] %v1207
  %s1212 = scalar_lea.vmem %s13, 16
  %1213 = vst [vmem:[%s1212] sm:$0xff] %v1208
  %1214 = vst [vmem:[%s1212 + $0x8] sm:$0xff] %v1209
  // Predicated region
  $region54: #{fixed_layer_forward.1} parent=0 // pred_check
    _
  $region55: #{fixed_layer_forward.1} parent=0 // pred_check_branch
    %1216 = sbr.rel (0) target = $region57
  $region56: #{fixed_layer_forward.1} parent=0 // pred_region
    _
  $region57: #{fixed_layer_forward.1} parent=0 // pred_fallthru
    _
  // Predicated region
  $region58: #{fixed_layer_forward.1} parent=0 // pred_check
    _
  $region59: #{fixed_layer_forward.1} parent=0 // pred_check_branch
    %1218 = sbr.rel (0) target = $region61
  $region60: #{fixed_layer_forward.1} parent=0 // pred_region
    _
  $region61: #{fixed_layer_forward.1} parent=0 // pred_fallthru
    _

</llo_original>
